<compile_context>
chip_gen: v6e
topology: v6e:2x2x1
jax: 0.10.0
libtpu: 0.0.40
codegen_flags: <defaults>
</compile_context>

<pallas_src>
import math

import jax
import jax.numpy as jnp
from jax import lax
from jax.experimental import pallas as pl
from jax.experimental.pallas import tpu as pltpu

# ----------------------------- configuration -------------------------------
SEQ = 16            # sequence length (L)
BATCH = 2           # batch size
EMBED = 64          # embed_dim (E)
HEADS = 4           # num_heads
HEAD_DIM = EMBED // HEADS
FF = 128            # ff_dim
EPS = 1e-5          # nn.LayerNorm default eps


# ------------------------------ Pallas kernel -------------------------------
def transformer_block_kernel(
    x_ref,                                  # (1, SEQ, EMBED)
    wqT_ref, wkT_ref, wvT_ref,              # (EMBED, EMBED) each (pre-transposed)
    bq_ref, bk_ref, bv_ref,                 # (1, EMBED) each
    woT_ref, bo_ref,                        # (EMBED, EMBED), (1, EMBED)
    g1_ref, b1n_ref,                        # (1, EMBED)  layernorm1 gamma/beta
    w1T_ref, bf1_ref,                       # (EMBED, FF), (1, FF)
    w2T_ref, bf2_ref,                       # (FF, EMBED), (1, EMBED)
    g2_ref, b2n_ref,                        # (1, EMBED)  layernorm2 gamma/beta
    o_ref,                                  # (1, SEQ, EMBED)
):
    x = x_ref[0]                            # (SEQ, EMBED) f32

    # ---------------- multi-head self-attention ----------------
    q = jnp.dot(x, wqT_ref[...], preferred_element_type=jnp.float32) + bq_ref[...]
    k = jnp.dot(x, wkT_ref[...], preferred_element_type=jnp.float32) + bk_ref[...]
    v = jnp.dot(x, wvT_ref[...], preferred_element_type=jnp.float32) + bv_ref[...]
    q = q * (1.0 / math.sqrt(HEAD_DIM))     # PyTorch scales q by head_dim**-0.5

    attn = jnp.zeros((SEQ, EMBED), jnp.float32)
    for h in range(HEADS):                  # static unroll; static lane slices
        s = h * HEAD_DIM
        qh = q[:, s:s + HEAD_DIM]           # (SEQ, HEAD_DIM)
        kh = k[:, s:s + HEAD_DIM]
        vh = v[:, s:s + HEAD_DIM]

        # scores = qh @ kh^T  (no explicit transpose relayout)
        scores = pl.dot(qh, kh, trans_b=True)                 # (SEQ, SEQ) f32
        scores = scores - jnp.max(scores, axis=-1, keepdims=True)
        p = jnp.exp(scores)
        p = p / jnp.sum(p, axis=-1, keepdims=True)

        oh = jnp.dot(p, vh, preferred_element_type=jnp.float32)   # (SEQ, HEAD_DIM)
        # Fold this head's slice of the output projection in directly
        # (avoids a head-concatenate relayout).
        attn = attn + jnp.dot(oh, woT_ref[s:s + HEAD_DIM, :],
                              preferred_element_type=jnp.float32)
    attn = attn + bo_ref[...]

    # ---------------- residual + layernorm1 ----------------
    x1 = x + attn
    mu1 = jnp.mean(x1, axis=-1, keepdims=True)
    xc1 = x1 - mu1
    var1 = jnp.mean(xc1 * xc1, axis=-1, keepdims=True)
    y1 = xc1 * lax.rsqrt(var1 + EPS) * g1_ref[...] + b1n_ref[...]

    # ---------------- feed-forward ----------------
    hdn = jnp.dot(y1, w1T_ref[...], preferred_element_type=jnp.float32) + bf1_ref[...]
    hdn = jnp.maximum(hdn, 0.0)
    ffn = jnp.dot(hdn, w2T_ref[...], preferred_element_type=jnp.float32) + bf2_ref[...]

    # ---------------- residual + layernorm2 ----------------
    x2 = y1 + ffn
    mu2 = jnp.mean(x2, axis=-1, keepdims=True)
    xc2 = x2 - mu2
    var2 = jnp.mean(xc2 * xc2, axis=-1, keepdims=True)
    o_ref[0] = xc2 * lax.rsqrt(var2 + EPS) * g2_ref[...] + b2n_ref[...]


# --------------------------------- wrapper -----------------------------------
def transformer_block(x_lbe, params):
    """x_lbe: (SEQ, BATCH, EMBED) f32 (PyTorch MHA seq-first layout)."""
    (wqT, wkT, wvT, bq, bk, bv, woT, bo,
     g1, b1n, w1T, bf1, w2T, bf2, g2, b2n) = params
    Ln, Bn, En = x_lbe.shape
    x_ble = jnp.transpose(x_lbe, (1, 0, 2))         # (B, L, E) for batch tiling

    def full_spec(a):
        n = a.ndim
        return pl.BlockSpec(a.shape, lambda b, _n=n: (0,) * _n)

    out = pl.pallas_call(
        transformer_block_kernel,
        out_shape=jax.ShapeDtypeStruct((Bn, Ln, En), x_lbe.dtype),
        grid_spec=pltpu.PrefetchScalarGridSpec(
            num_scalar_prefetch=0,
            grid=(Bn,),
            in_specs=[pl.BlockSpec((1, Ln, En), lambda b: (b, 0, 0))]
                     + [full_spec(w) for w in params],
            out_specs=pl.BlockSpec((1, Ln, En), lambda b: (b, 0, 0)),
        ),
        compiler_params=pltpu.CompilerParams(
            dimension_semantics=("parallel",)),
    )(x_ble, *params)

    return jnp.transpose(out, (1, 0, 2))            # back to (L, B, E)


# --------------------------- pure-JAX reference ------------------------------
def transformer_block_reference(x_lbe, params):
    (wqT, wkT, wvT, bq, bk, bv, woT, bo,
     g1, b1n, w1T, bf1, w2T, bf2, g2, b2n) = params
    x = jnp.transpose(x_lbe, (1, 0, 2))             # (B, L, E)
    Bn, Ln, En = x.shape

    with jax.default_matmul_precision("highest"):
        q = (x @ wqT + bq) * (1.0 / math.sqrt(HEAD_DIM))
        k = x @ wkT + bk
        v = x @ wvT + bv

        qh = q.reshape(Bn, Ln, HEADS, HEAD_DIM)
        kh = k.reshape(Bn, Ln, HEADS, HEAD_DIM)
        vh = v.reshape(Bn, Ln, HEADS, HEAD_DIM)

        scores = jnp.einsum("blhd,bmhd->bhlm", qh, kh)
        p = jax.nn.softmax(scores, axis=-1)
        ctx = jnp.einsum("bhlm,bmhd->blhd", p, vh).reshape(Bn, Ln, En)
        attn = ctx @ woT + bo

        def layer_norm(z, g, bta):
            mu = jnp.mean(z, axis=-1, keepdims=True)
            var = jnp.mean((z - mu) ** 2, axis=-1, keepdims=True)
            return (z - mu) / jnp.sqrt(var + EPS) * g + bta

        y1 = layer_norm(x + attn, g1, b1n)
        ffn = jnp.maximum(y1 @ w1T + bf1, 0.0) @ w2T + bf2
        y2 = layer_norm(y1 + ffn, g2, b2n)

    return jnp.transpose(y2, (1, 0, 2))


# --------------------------------- main --------------------------------------
if __name__ == "__main__":
    key = jax.random.PRNGKey(0)
    keys = jax.random.split(key, 20)
    s_e = 1.0 / math.sqrt(EMBED)
    s_f = 1.0 / math.sqrt(FF)

    x = jax.random.normal(keys[0], (SEQ, BATCH, EMBED), dtype=jnp.float32)

    # Attention in-projection (q/k/v) — stored pre-transposed for x @ W^T.
    wqT = jax.random.normal(keys[1], (EMBED, EMBED), jnp.float32) * s_e
    wkT = jax.random.normal(keys[2], (EMBED, EMBED), jnp.float32) * s_e
    wvT = jax.random.normal(keys[3], (EMBED, EMBED), jnp.float32) * s_e
    bq = jax.random.normal(keys[4], (1, EMBED), jnp.float32) * 0.1
    bk = jax.random.normal(keys[5], (1, EMBED), jnp.float32) * 0.1
    bv = jax.random.normal(keys[6], (1, EMBED), jnp.float32) * 0.1
    # Attention out-projection.
    woT = jax.random.normal(keys[7], (EMBED, EMBED), jnp.float32) * s_e
    bo = jax.random.normal(keys[8], (1, EMBED), jnp.float32) * 0.1
    # LayerNorm1.
    g1 = 1.0 + 0.1 * jax.random.normal(keys[9], (1, EMBED), jnp.float32)
    b1n = 0.1 * jax.random.normal(keys[10], (1, EMBED), jnp.float32)
    # FFN.
    w1T = jax.random.normal(keys[11], (EMBED, FF), jnp.float32) * s_e
    bf1 = jax.random.normal(keys[12], (1, FF), jnp.float32) * 0.1
    w2T = jax.random.normal(keys[13], (FF, EMBED), jnp.float32) * s_f
    bf2 = jax.random.normal(keys[14], (1, EMBED), jnp.float32) * 0.1
    # LayerNorm2.
    g2 = 1.0 + 0.1 * jax.random.normal(keys[15], (1, EMBED), jnp.float32)
    b2n = 0.1 * jax.random.normal(keys[16], (1, EMBED), jnp.float32)

    params = (wqT, wkT, wvT, bq, bk, bv, woT, bo,
              g1, b1n, w1T, bf1, w2T, bf2, g2, b2n)

    out = jax.block_until_ready(transformer_block(x, params))
    ref = transformer_block_reference(x, params)

    if not jnp.allclose(out, ref, atol=2e-3, rtol=2e-3):
        max_err = jnp.max(jnp.abs(out - ref))
        raise AssertionError(f"Pallas output mismatch, max abs err = {max_err}")

    print("KERNEL_OK")
</pallas_src>

<mosaic_0001>
module attributes {stable_mosaic.version = 11 : i64} {
  func.func @transformer_block_kernel(%arg0: i32, %arg1: memref<1x16x64xf32, #tpu.memory_space<vmem>>, %arg2: memref<64x64xf32, #tpu.memory_space<vmem>>, %arg3: memref<64x64xf32, #tpu.memory_space<vmem>>, %arg4: memref<64x64xf32, #tpu.memory_space<vmem>>, %arg5: memref<1x64xf32, #tpu.memory_space<vmem>>, %arg6: memref<1x64xf32, #tpu.memory_space<vmem>>, %arg7: memref<1x64xf32, #tpu.memory_space<vmem>>, %arg8: memref<64x64xf32, #tpu.memory_space<vmem>>, %arg9: memref<1x64xf32, #tpu.memory_space<vmem>>, %arg10: memref<1x64xf32, #tpu.memory_space<vmem>>, %arg11: memref<1x64xf32, #tpu.memory_space<vmem>>, %arg12: memref<64x128xf32, #tpu.memory_space<vmem>>, %arg13: memref<1x128xf32, #tpu.memory_space<vmem>>, %arg14: memref<128x64xf32, #tpu.memory_space<vmem>>, %arg15: memref<1x64xf32, #tpu.memory_space<vmem>>, %arg16: memref<1x64xf32, #tpu.memory_space<vmem>>, %arg17: memref<1x64xf32, #tpu.memory_space<vmem>>, %arg18: memref<1x16x64xf32, #tpu.memory_space<vmem>>) attributes {dimension_semantics = [#tpu.dimension_semantics<parallel>], iteration_bounds = array<i64: 2>, scalar_prefetch = 0 : i64, scratch_operands = 0 : i64, tpu.core_type = #tpu.core_type<tc>, window_params = [{transform_indices = @transform_0, window_bounds = array<i64: 1, 16, 64>}, {pipeline_mode = #tpu.pipeline_mode<synchronous>, transform_indices = @transform_1, window_bounds = array<i64: 64, 64>}, {pipeline_mode = #tpu.pipeline_mode<synchronous>, transform_indices = @transform_2, window_bounds = array<i64: 64, 64>}, {pipeline_mode = #tpu.pipeline_mode<synchronous>, transform_indices = @transform_3, window_bounds = array<i64: 64, 64>}, {pipeline_mode = #tpu.pipeline_mode<synchronous>, transform_indices = @transform_4, window_bounds = array<i64: 1, 64>}, {pipeline_mode = #tpu.pipeline_mode<synchronous>, transform_indices = @transform_5, window_bounds = array<i64: 1, 64>}, {pipeline_mode = #tpu.pipeline_mode<synchronous>, transform_indices = @transform_6, window_bounds = array<i64: 1, 64>}, {pipeline_mode = #tpu.pipeline_mode<synchronous>, transform_indices = @transform_7, window_bounds = array<i64: 64, 64>}, {pipeline_mode = #tpu.pipeline_mode<synchronous>, transform_indices = @transform_8, window_bounds = array<i64: 1, 64>}, {pipeline_mode = #tpu.pipeline_mode<synchronous>, transform_indices = @transform_9, window_bounds = array<i64: 1, 64>}, {pipeline_mode = #tpu.pipeline_mode<synchronous>, transform_indices = @transform_10, window_bounds = array<i64: 1, 64>}, {pipeline_mode = #tpu.pipeline_mode<synchronous>, transform_indices = @transform_11, window_bounds = array<i64: 64, 128>}, {pipeline_mode = #tpu.pipeline_mode<synchronous>, transform_indices = @transform_12, window_bounds = array<i64: 1, 128>}, {pipeline_mode = #tpu.pipeline_mode<synchronous>, transform_indices = @transform_13, window_bounds = array<i64: 128, 64>}, {pipeline_mode = #tpu.pipeline_mode<synchronous>, transform_indices = @transform_14, window_bounds = array<i64: 1, 64>}, {pipeline_mode = #tpu.pipeline_mode<synchronous>, transform_indices = @transform_15, window_bounds = array<i64: 1, 64>}, {pipeline_mode = #tpu.pipeline_mode<synchronous>, transform_indices = @transform_16, window_bounds = array<i64: 1, 64>}, {transform_indices = @transform_17, window_bounds = array<i64: 1, 16, 64>}]} {
    %c0 = arith.constant 0 : index
    %c0_0 = arith.constant 0 : index
    %c0_1 = arith.constant 0 : index
    %0 = vector.load %arg1[%c0, %c0_0, %c0_1] : memref<1x16x64xf32, #tpu.memory_space<vmem>>, vector<1x16x64xf32>
    %1 = vector.shape_cast %0 : vector<1x16x64xf32> to vector<16x64xf32>
    %c0_2 = arith.constant 0 : index
    %c0_3 = arith.constant 0 : index
    %2 = vector.load %arg2[%c0_2, %c0_3] : memref<64x64xf32, #tpu.memory_space<vmem>>, vector<64x64xf32>
    %cst = arith.constant dense<0.000000e+00> : vector<16x64xf32>
    %3 = tpu.matmul %1, %2, %cst {dimension_numbers = #tpu.dot_dimension_numbers<[1], [0], [0], [1], [0, 0, 1, 1], [], []>} : vector<16x64xf32>, vector<64x64xf32>, vector<16x64xf32> -> vector<16x64xf32>
    %c0_4 = arith.constant 0 : index
    %c0_5 = arith.constant 0 : index
    %4 = vector.load %arg5[%c0_4, %c0_5] : memref<1x64xf32, #tpu.memory_space<vmem>>, vector<1x64xf32>
    %5 = vector.broadcast %4 : vector<1x64xf32> to vector<16x64xf32>
    %6 = arith.addf %3, %5 : vector<16x64xf32>
    %c0_6 = arith.constant 0 : index
    %c0_7 = arith.constant 0 : index
    %7 = vector.load %arg3[%c0_6, %c0_7] : memref<64x64xf32, #tpu.memory_space<vmem>>, vector<64x64xf32>
    %cst_8 = arith.constant dense<0.000000e+00> : vector<16x64xf32>
    %8 = tpu.matmul %1, %7, %cst_8 {dimension_numbers = #tpu.dot_dimension_numbers<[1], [0], [0], [1], [0, 0, 1, 1], [], []>} : vector<16x64xf32>, vector<64x64xf32>, vector<16x64xf32> -> vector<16x64xf32>
    %c0_9 = arith.constant 0 : index
    %c0_10 = arith.constant 0 : index
    %9 = vector.load %arg6[%c0_9, %c0_10] : memref<1x64xf32, #tpu.memory_space<vmem>>, vector<1x64xf32>
    %10 = vector.broadcast %9 : vector<1x64xf32> to vector<16x64xf32>
    %11 = arith.addf %8, %10 : vector<16x64xf32>
    %c0_11 = arith.constant 0 : index
    %c0_12 = arith.constant 0 : index
    %12 = vector.load %arg4[%c0_11, %c0_12] : memref<64x64xf32, #tpu.memory_space<vmem>>, vector<64x64xf32>
    %cst_13 = arith.constant dense<0.000000e+00> : vector<16x64xf32>
    %13 = tpu.matmul %1, %12, %cst_13 {dimension_numbers = #tpu.dot_dimension_numbers<[1], [0], [0], [1], [0, 0, 1, 1], [], []>} : vector<16x64xf32>, vector<64x64xf32>, vector<16x64xf32> -> vector<16x64xf32>
    %c0_14 = arith.constant 0 : index
    %c0_15 = arith.constant 0 : index
    %14 = vector.load %arg7[%c0_14, %c0_15] : memref<1x64xf32, #tpu.memory_space<vmem>>, vector<1x64xf32>
    %15 = vector.broadcast %14 : vector<1x64xf32> to vector<16x64xf32>
    %16 = arith.addf %13, %15 : vector<16x64xf32>
    %cst_16 = arith.constant 2.500000e-01 : f32
    %17 = vector.broadcast %cst_16 : f32 to vector<16x64xf32>
    %18 = arith.mulf %6, %17 : vector<16x64xf32>
    %cst_17 = arith.constant 0.000000e+00 : f32
    %19 = vector.broadcast %cst_17 : f32 to vector<16x64xf32>
    %20 = vector.extract_strided_slice %18 {offsets = [0, 0], sizes = [16, 16], strides = [1, 1]} : vector<16x64xf32> to vector<16x16xf32>
    %21 = vector.extract_strided_slice %11 {offsets = [0, 0], sizes = [16, 16], strides = [1, 1]} : vector<16x64xf32> to vector<16x16xf32>
    %22 = vector.extract_strided_slice %16 {offsets = [0, 0], sizes = [16, 16], strides = [1, 1]} : vector<16x64xf32> to vector<16x16xf32>
    %cst_18 = arith.constant dense<0.000000e+00> : vector<16x16xf32>
    %23 = tpu.matmul %20, %21, %cst_18 {dimension_numbers = #tpu.dot_dimension_numbers<[1], [1], [0], [0], [0, 0, 1, 0], [], []>} : vector<16x16xf32>, vector<16x16xf32>, vector<16x16xf32> -> vector<16x16xf32>
    %cst_19 = arith.constant dense<0xFF800000> : vector<16xf32>
    %24 = vector.multi_reduction <maximumf>, %23, %cst_19 [1] : vector<16x16xf32> to vector<16xf32>
    %25 = vector.shape_cast %24 : vector<16xf32> to vector<16x1xf32>
    %26 = vector.broadcast %25 : vector<16x1xf32> to vector<16x16xf32>
    %27 = arith.subf %23, %26 : vector<16x16xf32>
    %28 = math.exp %27 : vector<16x16xf32>
    %cst_20 = arith.constant dense<0.000000e+00> : vector<16xf32>
    %29 = vector.multi_reduction <add>, %28, %cst_20 [1] : vector<16x16xf32> to vector<16xf32>
    %30 = vector.shape_cast %29 : vector<16xf32> to vector<16x1xf32>
    %31 = vector.broadcast %30 : vector<16x1xf32> to vector<16x16xf32>
    %32 = arith.divf %28, %31 : vector<16x16xf32>
    %cst_21 = arith.constant dense<0.000000e+00> : vector<16x16xf32>
    %33 = tpu.matmul %32, %22, %cst_21 {dimension_numbers = #tpu.dot_dimension_numbers<[1], [0], [0], [1], [0, 0, 1, 1], [], []>} : vector<16x16xf32>, vector<16x16xf32>, vector<16x16xf32> -> vector<16x16xf32>
    %c0_22 = arith.constant 0 : index
    %c0_23 = arith.constant 0 : index
    %34 = vector.load %arg8[%c0_22, %c0_23] : memref<64x64xf32, #tpu.memory_space<vmem>>, vector<16x64xf32>
    %cst_24 = arith.constant dense<0.000000e+00> : vector<16x64xf32>
    %35 = tpu.matmul %33, %34, %cst_24 {dimension_numbers = #tpu.dot_dimension_numbers<[1], [0], [0], [1], [0, 0, 1, 1], [], []>} : vector<16x16xf32>, vector<16x64xf32>, vector<16x64xf32> -> vector<16x64xf32>
    %36 = arith.addf %19, %35 : vector<16x64xf32>
    %37 = vector.extract_strided_slice %18 {offsets = [0, 16], sizes = [16, 16], strides = [1, 1]} : vector<16x64xf32> to vector<16x16xf32>
    %38 = vector.extract_strided_slice %11 {offsets = [0, 16], sizes = [16, 16], strides = [1, 1]} : vector<16x64xf32> to vector<16x16xf32>
    %39 = vector.extract_strided_slice %16 {offsets = [0, 16], sizes = [16, 16], strides = [1, 1]} : vector<16x64xf32> to vector<16x16xf32>
    %cst_25 = arith.constant dense<0.000000e+00> : vector<16x16xf32>
    %40 = tpu.matmul %37, %38, %cst_25 {dimension_numbers = #tpu.dot_dimension_numbers<[1], [1], [0], [0], [0, 0, 1, 0], [], []>} : vector<16x16xf32>, vector<16x16xf32>, vector<16x16xf32> -> vector<16x16xf32>
    %cst_26 = arith.constant dense<0xFF800000> : vector<16xf32>
    %41 = vector.multi_reduction <maximumf>, %40, %cst_26 [1] : vector<16x16xf32> to vector<16xf32>
    %42 = vector.shape_cast %41 : vector<16xf32> to vector<16x1xf32>
    %43 = vector.broadcast %42 : vector<16x1xf32> to vector<16x16xf32>
    %44 = arith.subf %40, %43 : vector<16x16xf32>
    %45 = math.exp %44 : vector<16x16xf32>
    %cst_27 = arith.constant dense<0.000000e+00> : vector<16xf32>
    %46 = vector.multi_reduction <add>, %45, %cst_27 [1] : vector<16x16xf32> to vector<16xf32>
    %47 = vector.shape_cast %46 : vector<16xf32> to vector<16x1xf32>
    %48 = vector.broadcast %47 : vector<16x1xf32> to vector<16x16xf32>
    %49 = arith.divf %45, %48 : vector<16x16xf32>
    %cst_28 = arith.constant dense<0.000000e+00> : vector<16x16xf32>
    %50 = tpu.matmul %49, %39, %cst_28 {dimension_numbers = #tpu.dot_dimension_numbers<[1], [0], [0], [1], [0, 0, 1, 1], [], []>} : vector<16x16xf32>, vector<16x16xf32>, vector<16x16xf32> -> vector<16x16xf32>
    %c16 = arith.constant 16 : index
    %c0_29 = arith.constant 0 : index
    %51 = vector.load %arg8[%c16, %c0_29] : memref<64x64xf32, #tpu.memory_space<vmem>>, vector<16x64xf32>
    %cst_30 = arith.constant dense<0.000000e+00> : vector<16x64xf32>
    %52 = tpu.matmul %50, %51, %cst_30 {dimension_numbers = #tpu.dot_dimension_numbers<[1], [0], [0], [1], [0, 0, 1, 1], [], []>} : vector<16x16xf32>, vector<16x64xf32>, vector<16x64xf32> -> vector<16x64xf32>
    %53 = arith.addf %36, %52 : vector<16x64xf32>
    %54 = vector.extract_strided_slice %18 {offsets = [0, 32], sizes = [16, 16], strides = [1, 1]} : vector<16x64xf32> to vector<16x16xf32>
    %55 = vector.extract_strided_slice %11 {offsets = [0, 32], sizes = [16, 16], strides = [1, 1]} : vector<16x64xf32> to vector<16x16xf32>
    %56 = vector.extract_strided_slice %16 {offsets = [0, 32], sizes = [16, 16], strides = [1, 1]} : vector<16x64xf32> to vector<16x16xf32>
    %cst_31 = arith.constant dense<0.000000e+00> : vector<16x16xf32>
    %57 = tpu.matmul %54, %55, %cst_31 {dimension_numbers = #tpu.dot_dimension_numbers<[1], [1], [0], [0], [0, 0, 1, 0], [], []>} : vector<16x16xf32>, vector<16x16xf32>, vector<16x16xf32> -> vector<16x16xf32>
    %cst_32 = arith.constant dense<0xFF800000> : vector<16xf32>
    %58 = vector.multi_reduction <maximumf>, %57, %cst_32 [1] : vector<16x16xf32> to vector<16xf32>
    %59 = vector.shape_cast %58 : vector<16xf32> to vector<16x1xf32>
    %60 = vector.broadcast %59 : vector<16x1xf32> to vector<16x16xf32>
    %61 = arith.subf %57, %60 : vector<16x16xf32>
    %62 = math.exp %61 : vector<16x16xf32>
    %cst_33 = arith.constant dense<0.000000e+00> : vector<16xf32>
    %63 = vector.multi_reduction <add>, %62, %cst_33 [1] : vector<16x16xf32> to vector<16xf32>
    %64 = vector.shape_cast %63 : vector<16xf32> to vector<16x1xf32>
    %65 = vector.broadcast %64 : vector<16x1xf32> to vector<16x16xf32>
    %66 = arith.divf %62, %65 : vector<16x16xf32>
    %cst_34 = arith.constant dense<0.000000e+00> : vector<16x16xf32>
    %67 = tpu.matmul %66, %56, %cst_34 {dimension_numbers = #tpu.dot_dimension_numbers<[1], [0], [0], [1], [0, 0, 1, 1], [], []>} : vector<16x16xf32>, vector<16x16xf32>, vector<16x16xf32> -> vector<16x16xf32>
    %c32 = arith.constant 32 : index
    %c0_35 = arith.constant 0 : index
    %68 = vector.load %arg8[%c32, %c0_35] : memref<64x64xf32, #tpu.memory_space<vmem>>, vector<16x64xf32>
    %cst_36 = arith.constant dense<0.000000e+00> : vector<16x64xf32>
    %69 = tpu.matmul %67, %68, %cst_36 {dimension_numbers = #tpu.dot_dimension_numbers<[1], [0], [0], [1], [0, 0, 1, 1], [], []>} : vector<16x16xf32>, vector<16x64xf32>, vector<16x64xf32> -> vector<16x64xf32>
    %70 = arith.addf %53, %69 : vector<16x64xf32>
    %71 = vector.extract_strided_slice %18 {offsets = [0, 48], sizes = [16, 16], strides = [1, 1]} : vector<16x64xf32> to vector<16x16xf32>
    %72 = vector.extract_strided_slice %11 {offsets = [0, 48], sizes = [16, 16], strides = [1, 1]} : vector<16x64xf32> to vector<16x16xf32>
    %73 = vector.extract_strided_slice %16 {offsets = [0, 48], sizes = [16, 16], strides = [1, 1]} : vector<16x64xf32> to vector<16x16xf32>
    %cst_37 = arith.constant dense<0.000000e+00> : vector<16x16xf32>
    %74 = tpu.matmul %71, %72, %cst_37 {dimension_numbers = #tpu.dot_dimension_numbers<[1], [1], [0], [0], [0, 0, 1, 0], [], []>} : vector<16x16xf32>, vector<16x16xf32>, vector<16x16xf32> -> vector<16x16xf32>
    %cst_38 = arith.constant dense<0xFF800000> : vector<16xf32>
    %75 = vector.multi_reduction <maximumf>, %74, %cst_38 [1] : vector<16x16xf32> to vector<16xf32>
    %76 = vector.shape_cast %75 : vector<16xf32> to vector<16x1xf32>
    %77 = vector.broadcast %76 : vector<16x1xf32> to vector<16x16xf32>
    %78 = arith.subf %74, %77 : vector<16x16xf32>
    %79 = math.exp %78 : vector<16x16xf32>
    %cst_39 = arith.constant dense<0.000000e+00> : vector<16xf32>
    %80 = vector.multi_reduction <add>, %79, %cst_39 [1] : vector<16x16xf32> to vector<16xf32>
    %81 = vector.shape_cast %80 : vector<16xf32> to vector<16x1xf32>
    %82 = vector.broadcast %81 : vector<16x1xf32> to vector<16x16xf32>
    %83 = arith.divf %79, %82 : vector<16x16xf32>
    %cst_40 = arith.constant dense<0.000000e+00> : vector<16x16xf32>
    %84 = tpu.matmul %83, %73, %cst_40 {dimension_numbers = #tpu.dot_dimension_numbers<[1], [0], [0], [1], [0, 0, 1, 1], [], []>} : vector<16x16xf32>, vector<16x16xf32>, vector<16x16xf32> -> vector<16x16xf32>
    %c48 = arith.constant 48 : index
    %c0_41 = arith.constant 0 : index
    %85 = vector.load %arg8[%c48, %c0_41] : memref<64x64xf32, #tpu.memory_space<vmem>>, vector<16x64xf32>
    %cst_42 = arith.constant dense<0.000000e+00> : vector<16x64xf32>
    %86 = tpu.matmul %84, %85, %cst_42 {dimension_numbers = #tpu.dot_dimension_numbers<[1], [0], [0], [1], [0, 0, 1, 1], [], []>} : vector<16x16xf32>, vector<16x64xf32>, vector<16x64xf32> -> vector<16x64xf32>
    %87 = arith.addf %70, %86 : vector<16x64xf32>
    %c0_43 = arith.constant 0 : index
    %c0_44 = arith.constant 0 : index
    %88 = vector.load %arg9[%c0_43, %c0_44] : memref<1x64xf32, #tpu.memory_space<vmem>>, vector<1x64xf32>
    %89 = vector.broadcast %88 : vector<1x64xf32> to vector<16x64xf32>
    %90 = arith.addf %87, %89 : vector<16x64xf32>
    %91 = arith.addf %1, %90 : vector<16x64xf32>
    %cst_45 = arith.constant dense<0.000000e+00> : vector<16xf32>
    %92 = vector.multi_reduction <add>, %91, %cst_45 [1] : vector<16x64xf32> to vector<16xf32>
    %93 = vector.shape_cast %92 : vector<16xf32> to vector<16x1xf32>
    %cst_46 = arith.constant 6.400000e+01 : f32
    %94 = vector.broadcast %cst_46 : f32 to vector<16x1xf32>
    %95 = arith.divf %93, %94 : vector<16x1xf32>
    %96 = vector.broadcast %95 : vector<16x1xf32> to vector<16x64xf32>
    %97 = arith.subf %91, %96 : vector<16x64xf32>
    %98 = arith.mulf %97, %97 : vector<16x64xf32>
    %cst_47 = arith.constant dense<0.000000e+00> : vector<16xf32>
    %99 = vector.multi_reduction <add>, %98, %cst_47 [1] : vector<16x64xf32> to vector<16xf32>
    %100 = vector.shape_cast %99 : vector<16xf32> to vector<16x1xf32>
    %cst_48 = arith.constant 6.400000e+01 : f32
    %101 = vector.broadcast %cst_48 : f32 to vector<16x1xf32>
    %102 = arith.divf %100, %101 : vector<16x1xf32>
    %cst_49 = arith.constant 9.99999974E-6 : f32
    %103 = vector.broadcast %cst_49 : f32 to vector<16x1xf32>
    %104 = arith.addf %102, %103 : vector<16x1xf32>
    %105 = math.rsqrt %104 : vector<16x1xf32>
    %106 = vector.broadcast %105 : vector<16x1xf32> to vector<16x64xf32>
    %107 = arith.mulf %97, %106 : vector<16x64xf32>
    %c0_50 = arith.constant 0 : index
    %c0_51 = arith.constant 0 : index
    %108 = vector.load %arg10[%c0_50, %c0_51] : memref<1x64xf32, #tpu.memory_space<vmem>>, vector<1x64xf32>
    %109 = vector.broadcast %108 : vector<1x64xf32> to vector<16x64xf32>
    %110 = arith.mulf %107, %109 : vector<16x64xf32>
    %c0_52 = arith.constant 0 : index
    %c0_53 = arith.constant 0 : index
    %111 = vector.load %arg11[%c0_52, %c0_53] : memref<1x64xf32, #tpu.memory_space<vmem>>, vector<1x64xf32>
    %112 = vector.broadcast %111 : vector<1x64xf32> to vector<16x64xf32>
    %113 = arith.addf %110, %112 : vector<16x64xf32>
    %c0_54 = arith.constant 0 : index
    %c0_55 = arith.constant 0 : index
    %114 = vector.load %arg12[%c0_54, %c0_55] : memref<64x128xf32, #tpu.memory_space<vmem>>, vector<64x128xf32>
    %cst_56 = arith.constant dense<0.000000e+00> : vector<16x128xf32>
    %115 = tpu.matmul %113, %114, %cst_56 {dimension_numbers = #tpu.dot_dimension_numbers<[1], [0], [0], [1], [0, 0, 1, 1], [], []>} : vector<16x64xf32>, vector<64x128xf32>, vector<16x128xf32> -> vector<16x128xf32>
    %c0_57 = arith.constant 0 : index
    %c0_58 = arith.constant 0 : index
    %116 = vector.load %arg13[%c0_57, %c0_58] : memref<1x128xf32, #tpu.memory_space<vmem>>, vector<1x128xf32>
    %117 = vector.broadcast %116 : vector<1x128xf32> to vector<16x128xf32>
    %118 = arith.addf %115, %117 : vector<16x128xf32>
    %cst_59 = arith.constant 0.000000e+00 : f32
    %119 = vector.broadcast %cst_59 : f32 to vector<16x128xf32>
    %120 = arith.maximumf %118, %119 : vector<16x128xf32>
    %c0_60 = arith.constant 0 : index
    %c0_61 = arith.constant 0 : index
    %121 = vector.load %arg14[%c0_60, %c0_61] : memref<128x64xf32, #tpu.memory_space<vmem>>, vector<128x64xf32>
    %cst_62 = arith.constant dense<0.000000e+00> : vector<16x64xf32>
    %122 = tpu.matmul %120, %121, %cst_62 {dimension_numbers = #tpu.dot_dimension_numbers<[1], [0], [0], [1], [0, 0, 1, 1], [], []>} : vector<16x128xf32>, vector<128x64xf32>, vector<16x64xf32> -> vector<16x64xf32>
    %c0_63 = arith.constant 0 : index
    %c0_64 = arith.constant 0 : index
    %123 = vector.load %arg15[%c0_63, %c0_64] : memref<1x64xf32, #tpu.memory_space<vmem>>, vector<1x64xf32>
    %124 = vector.broadcast %123 : vector<1x64xf32> to vector<16x64xf32>
    %125 = arith.addf %122, %124 : vector<16x64xf32>
    %126 = arith.addf %113, %125 : vector<16x64xf32>
    %cst_65 = arith.constant dense<0.000000e+00> : vector<16xf32>
    %127 = vector.multi_reduction <add>, %126, %cst_65 [1] : vector<16x64xf32> to vector<16xf32>
    %128 = vector.shape_cast %127 : vector<16xf32> to vector<16x1xf32>
    %cst_66 = arith.constant 6.400000e+01 : f32
    %129 = vector.broadcast %cst_66 : f32 to vector<16x1xf32>
    %130 = arith.divf %128, %129 : vector<16x1xf32>
    %131 = vector.broadcast %130 : vector<16x1xf32> to vector<16x64xf32>
    %132 = arith.subf %126, %131 : vector<16x64xf32>
    %133 = arith.mulf %132, %132 : vector<16x64xf32>
    %cst_67 = arith.constant dense<0.000000e+00> : vector<16xf32>
    %134 = vector.multi_reduction <add>, %133, %cst_67 [1] : vector<16x64xf32> to vector<16xf32>
    %135 = vector.shape_cast %134 : vector<16xf32> to vector<16x1xf32>
    %cst_68 = arith.constant 6.400000e+01 : f32
    %136 = vector.broadcast %cst_68 : f32 to vector<16x1xf32>
    %137 = arith.divf %135, %136 : vector<16x1xf32>
    %cst_69 = arith.constant 9.99999974E-6 : f32
    %138 = vector.broadcast %cst_69 : f32 to vector<16x1xf32>
    %139 = arith.addf %137, %138 : vector<16x1xf32>
    %140 = math.rsqrt %139 : vector<16x1xf32>
    %141 = vector.broadcast %140 : vector<16x1xf32> to vector<16x64xf32>
    %142 = arith.mulf %132, %141 : vector<16x64xf32>
    %c0_70 = arith.constant 0 : index
    %c0_71 = arith.constant 0 : index
    %143 = vector.load %arg16[%c0_70, %c0_71] : memref<1x64xf32, #tpu.memory_space<vmem>>, vector<1x64xf32>
    %144 = vector.broadcast %143 : vector<1x64xf32> to vector<16x64xf32>
    %145 = arith.mulf %142, %144 : vector<16x64xf32>
    %c0_72 = arith.constant 0 : index
    %c0_73 = arith.constant 0 : index
    %146 = vector.load %arg17[%c0_72, %c0_73] : memref<1x64xf32, #tpu.memory_space<vmem>>, vector<1x64xf32>
    %147 = vector.broadcast %146 : vector<1x64xf32> to vector<16x64xf32>
    %148 = arith.addf %145, %147 : vector<16x64xf32>
    %c0_74 = arith.constant 0 : index
    %c0_75 = arith.constant 0 : index
    %c0_76 = arith.constant 0 : index
    %149 = vector.load %arg18[%c0_74, %c0_75, %c0_76] : memref<1x16x64xf32, #tpu.memory_space<vmem>>, vector<1x16x64xf32>
    %150 = vector.shape_cast %149 : vector<1x16x64xf32> to vector<16x64xf32>
    %151 = vector.shape_cast %148 : vector<16x64xf32> to vector<1x16x64xf32>
    tpu.vector_store %arg18[%c0_74, %c0_75, %c0_76], %151 {strides = array<i32>} : memref<1x16x64xf32, #tpu.memory_space<vmem>>, vector<1x16x64xf32>,
    return
  }
  func.func @transform_0(%arg0: i32) -> (i32, i32, i32) {
    %c0_i32 = arith.constant 0 : i32
    %c0_i32_0 = arith.constant 0 : i32
    %c0_i32_1 = arith.constant 0 : i32
    return %arg0, %c0_i32, %c0_i32_0 : i32, i32, i32
  }
  func.func @transform_1(%arg0: i32) -> (i32, i32) {
    %c0_i32 = arith.constant 0 : i32
    %c0_i32_0 = arith.constant 0 : i32
    %c0_i32_1 = arith.constant 0 : i32
    return %c0_i32, %c0_i32_0 : i32, i32
  }
  func.func @transform_2(%arg0: i32) -> (i32, i32) {
    %c0_i32 = arith.constant 0 : i32
    %c0_i32_0 = arith.constant 0 : i32
    %c0_i32_1 = arith.constant 0 : i32
    return %c0_i32, %c0_i32_0 : i32, i32
  }
  func.func @transform_3(%arg0: i32) -> (i32, i32) {
    %c0_i32 = arith.constant 0 : i32
    %c0_i32_0 = arith.constant 0 : i32
    %c0_i32_1 = arith.constant 0 : i32
    return %c0_i32, %c0_i32_0 : i32, i32
  }
  func.func @transform_4(%arg0: i32) -> (i32, i32) {
    %c0_i32 = arith.constant 0 : i32
    %c0_i32_0 = arith.constant 0 : i32
    %c0_i32_1 = arith.constant 0 : i32
    return %c0_i32, %c0_i32_0 : i32, i32
  }
  func.func @transform_5(%arg0: i32) -> (i32, i32) {
    %c0_i32 = arith.constant 0 : i32
    %c0_i32_0 = arith.constant 0 : i32
    %c0_i32_1 = arith.constant 0 : i32
    return %c0_i32, %c0_i32_0 : i32, i32
  }
  func.func @transform_6(%arg0: i32) -> (i32, i32) {
    %c0_i32 = arith.constant 0 : i32
    %c0_i32_0 = arith.constant 0 : i32
    %c0_i32_1 = arith.constant 0 : i32
    return %c0_i32, %c0_i32_0 : i32, i32
  }
  func.func @transform_7(%arg0: i32) -> (i32, i32) {
    %c0_i32 = arith.constant 0 : i32
    %c0_i32_0 = arith.constant 0 : i32
    %c0_i32_1 = arith.constant 0 : i32
    return %c0_i32, %c0_i32_0 : i32, i32
  }
  func.func @transform_8(%arg0: i32) -> (i32, i32) {
    %c0_i32 = arith.constant 0 : i32
    %c0_i32_0 = arith.constant 0 : i32
    %c0_i32_1 = arith.constant 0 : i32
    return %c0_i32, %c0_i32_0 : i32, i32
  }
  func.func @transform_9(%arg0: i32) -> (i32, i32) {
    %c0_i32 = arith.constant 0 : i32
    %c0_i32_0 = arith.constant 0 : i32
    %c0_i32_1 = arith.constant 0 : i32
    return %c0_i32, %c0_i32_0 : i32, i32
  }
  func.func @transform_10(%arg0: i32) -> (i32, i32) {
    %c0_i32 = arith.constant 0 : i32
    %c0_i32_0 = arith.constant 0 : i32
    %c0_i32_1 = arith.constant 0 : i32
    return %c0_i32, %c0_i32_0 : i32, i32
  }
  func.func @transform_11(%arg0: i32) -> (i32, i32) {
    %c0_i32 = arith.constant 0 : i32
    %c0_i32_0 = arith.constant 0 : i32
    %c0_i32_1 = arith.constant 0 : i32
    return %c0_i32, %c0_i32_0 : i32, i32
  }
  func.func @transform_12(%arg0: i32) -> (i32, i32) {
    %c0_i32 = arith.constant 0 : i32
    %c0_i32_0 = arith.constant 0 : i32
    %c0_i32_1 = arith.constant 0 : i32
    return %c0_i32, %c0_i32_0 : i32, i32
  }
  func.func @transform_13(%arg0: i32) -> (i32, i32) {
    %c0_i32 = arith.constant 0 : i32
    %c0_i32_0 = arith.constant 0 : i32
    %c0_i32_1 = arith.constant 0 : i32
    return %c0_i32, %c0_i32_0 : i32, i32
  }
  func.func @transform_14(%arg0: i32) -> (i32, i32) {
    %c0_i32 = arith.constant 0 : i32
    %c0_i32_0 = arith.constant 0 : i32
    %c0_i32_1 = arith.constant 0 : i32
    return %c0_i32, %c0_i32_0 : i32, i32
  }
  func.func @transform_15(%arg0: i32) -> (i32, i32) {
    %c0_i32 = arith.constant 0 : i32
    %c0_i32_0 = arith.constant 0 : i32
    %c0_i32_1 = arith.constant 0 : i32
    return %c0_i32, %c0_i32_0 : i32, i32
  }
  func.func @transform_16(%arg0: i32) -> (i32, i32) {
    %c0_i32 = arith.constant 0 : i32
    %c0_i32_0 = arith.constant 0 : i32
    %c0_i32_1 = arith.constant 0 : i32
    return %c0_i32, %c0_i32_0 : i32, i32
  }
  func.func @transform_17(%arg0: i32) -> (i32, i32, i32) {
    %c0_i32 = arith.constant 0 : i32
    %c0_i32_0 = arith.constant 0 : i32
    %c0_i32_1 = arith.constant 0 : i32
    return %arg0, %c0_i32, %c0_i32_0 : i32, i32, i32
  }
}

</mosaic_0001>

<llo_original>
// kernel: tpu_custom_call.1
$region0: #{tpu_custom_call.1}
  #allocation0 [shape = 'u32[]', space=smem, size = 0x4, offset = 0x4, fixed_abs, tag = 'smem constant byte address 0x4 - core index']
  #allocation1 [shape = 'u32[144,128]{1,0:T(1,128)}', space=vmem, size = 0x12000, scoped, tag = 'internal scratch']
  %s0 = inlined_call_operand.hbm [shape: f32[2,16,64], index: 0, kind: input, shape index: {}]
  %s1 = inlined_call_operand.vmem [shape: f32[64,64], index: 1, kind: input, shape index: {}]
  %s2 = inlined_call_operand.vmem [shape: f32[64,64], index: 2, kind: input, shape index: {}]
  %s3 = inlined_call_operand.vmem [shape: f32[64,64], index: 3, kind: input, shape index: {}]
  %s4 = inlined_call_operand.vmem [shape: f32[1,64], index: 4, kind: input, shape index: {}]
  %s5 = inlined_call_operand.vmem [shape: f32[1,64], index: 5, kind: input, shape index: {}]
  %s6 = inlined_call_operand.vmem [shape: f32[1,64], index: 6, kind: input, shape index: {}]
  %s7 = inlined_call_operand.hbm [shape: f32[64,64], index: 7, kind: input, shape index: {}]
  %s8 = inlined_call_operand.vmem [shape: f32[1,64], index: 8, kind: input, shape index: {}]
  %s9 = inlined_call_operand.vmem [shape: f32[1,64], index: 9, kind: input, shape index: {}]
  %s10 = inlined_call_operand.vmem [shape: f32[1,64], index: 10, kind: input, shape index: {}]
  %s11 = inlined_call_operand.hbm [shape: f32[64,128], index: 11, kind: input, shape index: {}]
  %s12 = inlined_call_operand.vmem [shape: f32[1,128], index: 12, kind: input, shape index: {}]
  %s13 = inlined_call_operand.vmem [shape: f32[128,64], index: 13, kind: input, shape index: {}]
  %s14 = inlined_call_operand.vmem [shape: f32[1,64], index: 14, kind: input, shape index: {}]
  %s15 = inlined_call_operand.vmem [shape: f32[1,64], index: 15, kind: input, shape index: {}]
  %s16 = inlined_call_operand.vmem [shape: f32[1,64], index: 16, kind: input, shape index: {}]
  %s17 = inlined_call_operand.hbm [shape: f32[2,16,64], index: 17, kind: output, shape index: {}]
  %s18 = sld [smem:[#allocation0]]
  $region113: #{tpu_custom_call.1} parent=0
    _
  %s20 = ssub.s32 1, %s18
  %s21 = scalar_select 0, %s20, %s18
  $region1: #{tpu_custom_call.1} parent=0
    #allocation2 [shape = 'u8[16384]{0}', space=vmem, size = 0x4000, scoped, tag = 'input window, operand 0']
    #allocation3 [shape = 's32[2]{0}', space=sflag, size = 0x8, scoped, tag = 'scoped memory for tpu_custom_call.1']
    #allocation4 [shape = 's32[2]{0}', space=sflag, size = 0x8, scoped, tag = 'scoped memory for tpu_custom_call.1']
    #allocation5 [shape = 'u8[32768]{0}', space=vmem, size = 0x8000, scoped, tag = 'input window, operand 7, single buffered']
    #allocation6 [shape = 's32[1]{0}', space=sflag, size = 0x4, scoped, tag = 'scoped memory for tpu_custom_call.1']
    #allocation7 [shape = 'u8[32768]{0}', space=vmem, size = 0x8000, scoped, tag = 'input window, operand 11, single buffered']
    #allocation8 [shape = 'u8[16384]{0}', space=vmem, size = 0x4000, scoped, tag = 'output window, operand 0']
    %22 = vsyncpa [#allocation3], 0
    %s23 = scalar_lea.sflag [#allocation3], 1
    %24 = vsyncpa %s23, 0
    %25 = vsyncpa [#allocation6], 0
    %26 = vsyncpa [#allocation4], 0
    %s27 = scalar_lea.sflag [#allocation4], 1
    %28 = vsyncpa %s27, 0
    loop: start=0, step=1, limit=4
    $region2: #{tpu_custom_call.1} parent=1 // loop_pre_header
      _
    $region3: #{tpu_custom_call.1} parent=1 // loop_header
      %s30 = sphi 0, %s34
      %p31 = scmp.ge.s32.totalorder %s30, 4
      %s40 = sphi 0, %s42
      %s43 = sphi 0, %s40
      %s44 = sphi 0, %s43
      %s60 = sphi 0, %s44
      %s64 = sphi 0, %s64
      %s66 = sphi 0, %s64
      %s67 = sphi 0, %s66
      %s81 = sphi 0, %s67
      %s85 = sphi 0, %s85
      %s87 = sphi 0, %s85
      %s88 = sphi 0, %s87
      %s102 = sphi 0, %s88
      %s106 = sphi 0, %s106
      %s108 = sphi 0, %s106
      %s109 = sphi 0, %s108
      %s123 = sphi 0, %s109
      %s127 = sphi 0, %s127
      %s129 = sphi 0, %s127
      %s130 = sphi 0, %s129
      %s144 = sphi 0, %s130
      %s148 = sphi 0, %s148
      %s150 = sphi 0, %s148
      %s151 = sphi 0, %s150
      %s165 = sphi 0, %s151
      %s169 = sphi 0, %s169
      %s171 = sphi 0, %s169
      %s172 = sphi 0, %s171
      %s186 = sphi 0, %s172
      %s190 = sphi 0, %s190
      %s192 = sphi 0, %s190
      %s193 = sphi 0, %s192
      %s207 = sphi 0, %s193
      %s211 = sphi 0, %s211
      %s213 = sphi 0, %s211
      %s214 = sphi 0, %s213
      %s228 = sphi 0, %s214
      %s232 = sphi 0, %s232
      %s234 = sphi 0, %s232
      %s235 = sphi 0, %s234
      %s249 = sphi 0, %s235
      %s253 = sphi 0, %s253
      %s255 = sphi 0, %s253
      %s256 = sphi 0, %s255
      %s270 = sphi 0, %s256
      %s274 = sphi 0, %s274
      %s276 = sphi 0, %s274
      %s277 = sphi 0, %s276
      %s291 = sphi 0, %s277
      %s295 = sphi 0, %s295
      %s297 = sphi 0, %s295
      %s298 = sphi 0, %s297
      %s312 = sphi 0, %s298
      %s316 = sphi 0, %s316
      %s318 = sphi 0, %s316
      %s319 = sphi 0, %s318
      %s333 = sphi 0, %s319
      %s337 = sphi 0, %s337
      %s339 = sphi 0, %s337
      %s340 = sphi 0, %s339
      %s354 = sphi 0, %s340
      %s358 = sphi 0, %s358
      %s360 = sphi 0, %s358
      %s361 = sphi 0, %s360
      %s375 = sphi 0, %s361
      %s379 = sphi 0, %s379
      %s381 = sphi 0, %s379
      %s382 = sphi 0, %s381
      %s396 = sphi 0, %s382
      %s402 = sphi 0, %s404
      %s405 = sphi 0, %s402
      %s406 = sphi 0, %s405
      %s422 = sphi 0, %s406
    $region4: #{tpu_custom_call.1} parent=1 // loop_header_branch
      %33 = sbr.rel (%p31) target = $region8
    $region5: #{tpu_custom_call.1} parent=1 // loop_body
      %s35 = ssub.s32 %s30, 1
      %s36 = ssub.s32 %s30, 2
      %s37 = sadd.s32 %s30, 1
      %s38 = ssub.s32 %s30, %s37
      %p39 = scmp.eq.s32.totalorder %s38, 0
      %s41 = sadd.s32 %s40, 1
      %s42 = scalar_select %p39, %s40, %s41
      %p45 = pneg %p39
      %p46 = scmp.eq.s32.totalorder %s30, 1
      %p47 = por %p45, %p46
      %p48 = scmp.ne.s32.totalorder %s40, %s43
      %p49 = scmp.eq.s32.totalorder %s30, 0
      %p50 = por %p48, %p49
      %p51 = scmp.ne.s32.totalorder %s40, %s43
      %p52 = scmp.eq.s32.totalorder %s35, 1
      %p53 = por %p51, %p52
      %p54 = scmp.ne.s32.totalorder %s43, %s44
      %p55 = scmp.eq.s32.totalorder %s35, 0
      %p56 = por %p54, %p55
      %p57 = scmp.ne.s32.totalorder %s43, %s44
      %p58 = scmp.eq.s32.totalorder %s36, 1
      %p59 = por %p57, %p58
      %p61 = scmp.ne.s32.totalorder %s44, %s60
      %p62 = scmp.eq.s32.totalorder %s36, 0
      %p63 = por %p61, %p62
      %s65 = sadd.s32 %s64, 1
      %p68 = scmp.eq.s32.totalorder %s30, 1
      %p69 = scmp.ne.s32.totalorder %s64, %s66
      %p70 = scmp.eq.s32.totalorder %s30, 0
      %p71 = por %p69, %p70
      %p72 = scmp.ne.s32.totalorder %s64, %s66
      %p73 = scmp.eq.s32.totalorder %s35, 1
      %p74 = por %p72, %p73
      %p75 = scmp.ne.s32.totalorder %s66, %s67
      %p76 = scmp.eq.s32.totalorder %s35, 0
      %p77 = por %p75, %p76
      %p78 = scmp.ne.s32.totalorder %s66, %s67
      %p79 = scmp.eq.s32.totalorder %s36, 1
      %p80 = por %p78, %p79
      %p82 = scmp.ne.s32.totalorder %s67, %s81
      %p83 = scmp.eq.s32.totalorder %s36, 0
      %p84 = por %p82, %p83
      %s86 = sadd.s32 %s85, 1
      %p89 = scmp.eq.s32.totalorder %s30, 1
      %p90 = scmp.ne.s32.totalorder %s85, %s87
      %p91 = scmp.eq.s32.totalorder %s30, 0
      %p92 = por %p90, %p91
      %p93 = scmp.ne.s32.totalorder %s85, %s87
      %p94 = scmp.eq.s32.totalorder %s35, 1
      %p95 = por %p93, %p94
      %p96 = scmp.ne.s32.totalorder %s87, %s88
      %p97 = scmp.eq.s32.totalorder %s35, 0
      %p98 = por %p96, %p97
      %p99 = scmp.ne.s32.totalorder %s87, %s88
      %p100 = scmp.eq.s32.totalorder %s36, 1
      %p101 = por %p99, %p100
      %p103 = scmp.ne.s32.totalorder %s88, %s102
      %p104 = scmp.eq.s32.totalorder %s36, 0
      %p105 = por %p103, %p104
      %s107 = sadd.s32 %s106, 1
      %p110 = scmp.eq.s32.totalorder %s30, 1
      %p111 = scmp.ne.s32.totalorder %s106, %s108
      %p112 = scmp.eq.s32.totalorder %s30, 0
      %p113 = por %p111, %p112
      %p114 = scmp.ne.s32.totalorder %s106, %s108
      %p115 = scmp.eq.s32.totalorder %s35, 1
      %p116 = por %p114, %p115
      %p117 = scmp.ne.s32.totalorder %s108, %s109
      %p118 = scmp.eq.s32.totalorder %s35, 0
      %p119 = por %p117, %p118
      %p120 = scmp.ne.s32.totalorder %s108, %s109
      %p121 = scmp.eq.s32.totalorder %s36, 1
      %p122 = por %p120, %p121
      %p124 = scmp.ne.s32.totalorder %s109, %s123
      %p125 = scmp.eq.s32.totalorder %s36, 0
      %p126 = por %p124, %p125
      %s128 = sadd.s32 %s127, 1
      %p131 = scmp.eq.s32.totalorder %s30, 1
      %p132 = scmp.ne.s32.totalorder %s127, %s129
      %p133 = scmp.eq.s32.totalorder %s30, 0
      %p134 = por %p132, %p133
      %p135 = scmp.ne.s32.totalorder %s127, %s129
      %p136 = scmp.eq.s32.totalorder %s35, 1
      %p137 = por %p135, %p136
      %p138 = scmp.ne.s32.totalorder %s129, %s130
      %p139 = scmp.eq.s32.totalorder %s35, 0
      %p140 = por %p138, %p139
      %p141 = scmp.ne.s32.totalorder %s129, %s130
      %p142 = scmp.eq.s32.totalorder %s36, 1
      %p143 = por %p141, %p142
      %p145 = scmp.ne.s32.totalorder %s130, %s144
      %p146 = scmp.eq.s32.totalorder %s36, 0
      %p147 = por %p145, %p146
      %s149 = sadd.s32 %s148, 1
      %p152 = scmp.eq.s32.totalorder %s30, 1
      %p153 = scmp.ne.s32.totalorder %s148, %s150
      %p154 = scmp.eq.s32.totalorder %s30, 0
      %p155 = por %p153, %p154
      %p156 = scmp.ne.s32.totalorder %s148, %s150
      %p157 = scmp.eq.s32.totalorder %s35, 1
      %p158 = por %p156, %p157
      %p159 = scmp.ne.s32.totalorder %s150, %s151
      %p160 = scmp.eq.s32.totalorder %s35, 0
      %p161 = por %p159, %p160
      %p162 = scmp.ne.s32.totalorder %s150, %s151
      %p163 = scmp.eq.s32.totalorder %s36, 1
      %p164 = por %p162, %p163
      %p166 = scmp.ne.s32.totalorder %s151, %s165
      %p167 = scmp.eq.s32.totalorder %s36, 0
      %p168 = por %p166, %p167
      %s170 = sadd.s32 %s169, 1
      %p173 = scmp.eq.s32.totalorder %s30, 1
      %p174 = scmp.ne.s32.totalorder %s169, %s171
      %p175 = scmp.eq.s32.totalorder %s30, 0
      %p176 = por %p174, %p175
      %p177 = scmp.ne.s32.totalorder %s169, %s171
      %p178 = scmp.eq.s32.totalorder %s35, 1
      %p179 = por %p177, %p178
      %p180 = scmp.ne.s32.totalorder %s171, %s172
      %p181 = scmp.eq.s32.totalorder %s35, 0
      %p182 = por %p180, %p181
      %p183 = scmp.ne.s32.totalorder %s171, %s172
      %p184 = scmp.eq.s32.totalorder %s36, 1
      %p185 = por %p183, %p184
      %p187 = scmp.ne.s32.totalorder %s172, %s186
      %p188 = scmp.eq.s32.totalorder %s36, 0
      %p189 = por %p187, %p188
      %s191 = sadd.s32 %s190, 1
      %p194 = scmp.eq.s32.totalorder %s30, 1
      %p195 = scmp.ne.s32.totalorder %s190, %s192
      %p196 = scmp.eq.s32.totalorder %s30, 0
      %p197 = por %p195, %p196
      %p198 = scmp.ne.s32.totalorder %s190, %s192
      %p199 = scmp.eq.s32.totalorder %s35, 1
      %p200 = por %p198, %p199
      %p201 = scmp.ne.s32.totalorder %s192, %s193
      %p202 = scmp.eq.s32.totalorder %s35, 0
      %p203 = por %p201, %p202
      %p204 = scmp.ne.s32.totalorder %s192, %s193
      %p205 = scmp.eq.s32.totalorder %s36, 1
      %p206 = por %p204, %p205
      %p208 = scmp.ne.s32.totalorder %s193, %s207
      %p209 = scmp.eq.s32.totalorder %s36, 0
      %p210 = por %p208, %p209
      %s212 = sadd.s32 %s211, 1
      %p215 = scmp.eq.s32.totalorder %s30, 1
      %p216 = scmp.ne.s32.totalorder %s211, %s213
      %p217 = scmp.eq.s32.totalorder %s30, 0
      %p218 = por %p216, %p217
      %p219 = scmp.ne.s32.totalorder %s211, %s213
      %p220 = scmp.eq.s32.totalorder %s35, 1
      %p221 = por %p219, %p220
      %p222 = scmp.ne.s32.totalorder %s213, %s214
      %p223 = scmp.eq.s32.totalorder %s35, 0
      %p224 = por %p222, %p223
      %p225 = scmp.ne.s32.totalorder %s213, %s214
      %p226 = scmp.eq.s32.totalorder %s36, 1
      %p227 = por %p225, %p226
      %p229 = scmp.ne.s32.totalorder %s214, %s228
      %p230 = scmp.eq.s32.totalorder %s36, 0
      %p231 = por %p229, %p230
      %s233 = sadd.s32 %s232, 1
      %p236 = scmp.eq.s32.totalorder %s30, 1
      %p237 = scmp.ne.s32.totalorder %s232, %s234
      %p238 = scmp.eq.s32.totalorder %s30, 0
      %p239 = por %p237, %p238
      %p240 = scmp.ne.s32.totalorder %s232, %s234
      %p241 = scmp.eq.s32.totalorder %s35, 1
      %p242 = por %p240, %p241
      %p243 = scmp.ne.s32.totalorder %s234, %s235
      %p244 = scmp.eq.s32.totalorder %s35, 0
      %p245 = por %p243, %p244
      %p246 = scmp.ne.s32.totalorder %s234, %s235
      %p247 = scmp.eq.s32.totalorder %s36, 1
      %p248 = por %p246, %p247
      %p250 = scmp.ne.s32.totalorder %s235, %s249
      %p251 = scmp.eq.s32.totalorder %s36, 0
      %p252 = por %p250, %p251
      %s254 = sadd.s32 %s253, 1
      %p257 = scmp.eq.s32.totalorder %s30, 1
      %p258 = scmp.ne.s32.totalorder %s253, %s255
      %p259 = scmp.eq.s32.totalorder %s30, 0
      %p260 = por %p258, %p259
      %p261 = scmp.ne.s32.totalorder %s253, %s255
      %p262 = scmp.eq.s32.totalorder %s35, 1
      %p263 = por %p261, %p262
      %p264 = scmp.ne.s32.totalorder %s255, %s256
      %p265 = scmp.eq.s32.totalorder %s35, 0
      %p266 = por %p264, %p265
      %p267 = scmp.ne.s32.totalorder %s255, %s256
      %p268 = scmp.eq.s32.totalorder %s36, 1
      %p269 = por %p267, %p268
      %p271 = scmp.ne.s32.totalorder %s256, %s270
      %p272 = scmp.eq.s32.totalorder %s36, 0
      %p273 = por %p271, %p272
      %s275 = sadd.s32 %s274, 1
      %p278 = scmp.eq.s32.totalorder %s30, 1
      %p279 = scmp.ne.s32.totalorder %s274, %s276
      %p280 = scmp.eq.s32.totalorder %s30, 0
      %p281 = por %p279, %p280
      %p282 = scmp.ne.s32.totalorder %s274, %s276
      %p283 = scmp.eq.s32.totalorder %s35, 1
      %p284 = por %p282, %p283
      %p285 = scmp.ne.s32.totalorder %s276, %s277
      %p286 = scmp.eq.s32.totalorder %s35, 0
      %p287 = por %p285, %p286
      %p288 = scmp.ne.s32.totalorder %s276, %s277
      %p289 = scmp.eq.s32.totalorder %s36, 1
      %p290 = por %p288, %p289
      %p292 = scmp.ne.s32.totalorder %s277, %s291
      %p293 = scmp.eq.s32.totalorder %s36, 0
      %p294 = por %p292, %p293
      %s296 = sadd.s32 %s295, 1
      %p299 = scmp.eq.s32.totalorder %s30, 1
      %p300 = scmp.ne.s32.totalorder %s295, %s297
      %p301 = scmp.eq.s32.totalorder %s30, 0
      %p302 = por %p300, %p301
      %p303 = scmp.ne.s32.totalorder %s295, %s297
      %p304 = scmp.eq.s32.totalorder %s35, 1
      %p305 = por %p303, %p304
      %p306 = scmp.ne.s32.totalorder %s297, %s298
      %p307 = scmp.eq.s32.totalorder %s35, 0
      %p308 = por %p306, %p307
      %p309 = scmp.ne.s32.totalorder %s297, %s298
      %p310 = scmp.eq.s32.totalorder %s36, 1
      %p311 = por %p309, %p310
      %p313 = scmp.ne.s32.totalorder %s298, %s312
      %p314 = scmp.eq.s32.totalorder %s36, 0
      %p315 = por %p313, %p314
      %s317 = sadd.s32 %s316, 1
      %p320 = scmp.eq.s32.totalorder %s30, 1
      %p321 = scmp.ne.s32.totalorder %s316, %s318
      %p322 = scmp.eq.s32.totalorder %s30, 0
      %p323 = por %p321, %p322
      %p324 = scmp.ne.s32.totalorder %s316, %s318
      %p325 = scmp.eq.s32.totalorder %s35, 1
      %p326 = por %p324, %p325
      %p327 = scmp.ne.s32.totalorder %s318, %s319
      %p328 = scmp.eq.s32.totalorder %s35, 0
      %p329 = por %p327, %p328
      %p330 = scmp.ne.s32.totalorder %s318, %s319
      %p331 = scmp.eq.s32.totalorder %s36, 1
      %p332 = por %p330, %p331
      %p334 = scmp.ne.s32.totalorder %s319, %s333
      %p335 = scmp.eq.s32.totalorder %s36, 0
      %p336 = por %p334, %p335
      %s338 = sadd.s32 %s337, 1
      %p341 = scmp.eq.s32.totalorder %s30, 1
      %p342 = scmp.ne.s32.totalorder %s337, %s339
      %p343 = scmp.eq.s32.totalorder %s30, 0
      %p344 = por %p342, %p343
      %p345 = scmp.ne.s32.totalorder %s337, %s339
      %p346 = scmp.eq.s32.totalorder %s35, 1
      %p347 = por %p345, %p346
      %p348 = scmp.ne.s32.totalorder %s339, %s340
      %p349 = scmp.eq.s32.totalorder %s35, 0
      %p350 = por %p348, %p349
      %p351 = scmp.ne.s32.totalorder %s339, %s340
      %p352 = scmp.eq.s32.totalorder %s36, 1
      %p353 = por %p351, %p352
      %p355 = scmp.ne.s32.totalorder %s340, %s354
      %p356 = scmp.eq.s32.totalorder %s36, 0
      %p357 = por %p355, %p356
      %s359 = sadd.s32 %s358, 1
      %p362 = scmp.eq.s32.totalorder %s30, 1
      %p363 = scmp.ne.s32.totalorder %s358, %s360
      %p364 = scmp.eq.s32.totalorder %s30, 0
      %p365 = por %p363, %p364
      %p366 = scmp.ne.s32.totalorder %s358, %s360
      %p367 = scmp.eq.s32.totalorder %s35, 1
      %p368 = por %p366, %p367
      %p369 = scmp.ne.s32.totalorder %s360, %s361
      %p370 = scmp.eq.s32.totalorder %s35, 0
      %p371 = por %p369, %p370
      %p372 = scmp.ne.s32.totalorder %s360, %s361
      %p373 = scmp.eq.s32.totalorder %s36, 1
      %p374 = por %p372, %p373
      %p376 = scmp.ne.s32.totalorder %s361, %s375
      %p377 = scmp.eq.s32.totalorder %s36, 0
      %p378 = por %p376, %p377
      %s380 = sadd.s32 %s379, 1
      %p383 = scmp.eq.s32.totalorder %s30, 1
      %p384 = scmp.ne.s32.totalorder %s379, %s381
      %p385 = scmp.eq.s32.totalorder %s30, 0
      %p386 = por %p384, %p385
      %p387 = scmp.ne.s32.totalorder %s379, %s381
      %p388 = scmp.eq.s32.totalorder %s35, 1
      %p389 = por %p387, %p388
      %p390 = scmp.ne.s32.totalorder %s381, %s382
      %p391 = scmp.eq.s32.totalorder %s35, 0
      %p392 = por %p390, %p391
      %p393 = scmp.ne.s32.totalorder %s381, %s382
      %p394 = scmp.eq.s32.totalorder %s36, 1
      %p395 = por %p393, %p394
      %p397 = scmp.ne.s32.totalorder %s382, %s396
      %p398 = scmp.eq.s32.totalorder %s36, 0
      %p399 = por %p397, %p398
      %s400 = ssub.s32 %s30, %s37
      %p401 = scmp.eq.s32.totalorder %s400, 0
      %s403 = sadd.s32 %s402, 1
      %s404 = scalar_select %p401, %s402, %s403
      %p407 = pneg %p401
      %p408 = scmp.eq.s32.totalorder %s30, 1
      %p409 = por %p407, %p408
      %p410 = scmp.ne.s32.totalorder %s402, %s405
      %p411 = scmp.eq.s32.totalorder %s30, 0
      %p412 = por %p410, %p411
      %p413 = scmp.ne.s32.totalorder %s402, %s405
      %p414 = scmp.eq.s32.totalorder %s35, 1
      %p415 = por %p413, %p414
      %p416 = scmp.ne.s32.totalorder %s405, %s406
      %p417 = scmp.eq.s32.totalorder %s35, 0
      %p418 = por %p416, %p417
      %p419 = scmp.ne.s32.totalorder %s405, %s406
      %p420 = scmp.eq.s32.totalorder %s36, 1
      %p421 = por %p419, %p420
      %p423 = scmp.ne.s32.totalorder %s406, %s422
      %p424 = scmp.eq.s32.totalorder %s36, 0
      %p425 = por %p423, %p424
      %p426 = scmp.le.s32.totalorder 1, %s30
      %p427 = scmp.lt.s32.totalorder %s30, 3
      %p428 = pnand %p426, %p427
      %p429 = pneg %p428
      // Predicated region
      $region9: #{tpu_custom_call.1} parent=5 // pred_check
        _
      $region10: #{tpu_custom_call.1} parent=5 // pred_check_branch
        %431 = sbr.rel (%p428) target = $region12
      $region11: #{tpu_custom_call.1} parent=5 // pred_region
        %s432 = ssub.s32 %s30, 1
        // Predicated region
        $region13: #{tpu_custom_call.1} parent=11 // pred_check
          %p433 = pneg %p77
        $region14: #{tpu_custom_call.1} parent=11 // pred_check_branch
          %435 = sbr.rel (%p433) target = $region16
        $region15: #{tpu_custom_call.1} parent=11 // pred_region
          _
        $region16: #{tpu_custom_call.1} parent=11 // pred_fallthru
          _
        // Predicated region
        $region17: #{tpu_custom_call.1} parent=11 // pred_check
          %p436 = pneg %p98
        $region18: #{tpu_custom_call.1} parent=11 // pred_check_branch
          %438 = sbr.rel (%p436) target = $region20
        $region19: #{tpu_custom_call.1} parent=11 // pred_region
          _
        $region20: #{tpu_custom_call.1} parent=11 // pred_fallthru
          _
        // Predicated region
        $region21: #{tpu_custom_call.1} parent=11 // pred_check
          %p439 = pneg %p119
        $region22: #{tpu_custom_call.1} parent=11 // pred_check_branch
          %441 = sbr.rel (%p439) target = $region24
        $region23: #{tpu_custom_call.1} parent=11 // pred_region
          _
        $region24: #{tpu_custom_call.1} parent=11 // pred_fallthru
          _
        // Predicated region
        $region25: #{tpu_custom_call.1} parent=11 // pred_check
          %p442 = pneg %p140
        $region26: #{tpu_custom_call.1} parent=11 // pred_check_branch
          %444 = sbr.rel (%p442) target = $region28
        $region27: #{tpu_custom_call.1} parent=11 // pred_region
          _
        $region28: #{tpu_custom_call.1} parent=11 // pred_fallthru
          _
        // Predicated region
        $region29: #{tpu_custom_call.1} parent=11 // pred_check
          %p445 = pneg %p161
        $region30: #{tpu_custom_call.1} parent=11 // pred_check_branch
          %447 = sbr.rel (%p445) target = $region32
        $region31: #{tpu_custom_call.1} parent=11 // pred_region
          _
        $region32: #{tpu_custom_call.1} parent=11 // pred_fallthru
          _
        // Predicated region
        $region33: #{tpu_custom_call.1} parent=11 // pred_check
          %p448 = pneg %p182
        $region34: #{tpu_custom_call.1} parent=11 // pred_check_branch
          %450 = sbr.rel (%p448) target = $region36
        $region35: #{tpu_custom_call.1} parent=11 // pred_region
          _
        $region36: #{tpu_custom_call.1} parent=11 // pred_fallthru
          _
        // Predicated region
        $region37: #{tpu_custom_call.1} parent=11 // pred_check
          %p451 = pneg %p203
        $region38: #{tpu_custom_call.1} parent=11 // pred_check_branch
          %453 = sbr.rel (%p451) target = $region40
        $region39: #{tpu_custom_call.1} parent=11 // pred_region
          %s455 = ssub.s32 1024, 1024
          %456 = vsyncadd [#allocation6], %s455
          %s457 = sshll.u32 [#allocation5], 4
          %s458 = int_to_ptr.vmem [resolvable:$true] %s457
          %463 = dma.hbm_to_vmem [thread:$0]  %s7, 1024, %s458, [#allocation6], 128, 128, 8
        $region40: #{tpu_custom_call.1} parent=11 // pred_fallthru
          _
        // Predicated region
        $region41: #{tpu_custom_call.1} parent=11 // pred_check
          %p464 = pneg %p224
        $region42: #{tpu_custom_call.1} parent=11 // pred_check_branch
          %466 = sbr.rel (%p464) target = $region44
        $region43: #{tpu_custom_call.1} parent=11 // pred_region
          _
        $region44: #{tpu_custom_call.1} parent=11 // pred_fallthru
          _
        // Predicated region
        $region45: #{tpu_custom_call.1} parent=11 // pred_check
          %p467 = pneg %p245
        $region46: #{tpu_custom_call.1} parent=11 // pred_check_branch
          %469 = sbr.rel (%p467) target = $region48
        $region47: #{tpu_custom_call.1} parent=11 // pred_region
          _
        $region48: #{tpu_custom_call.1} parent=11 // pred_fallthru
          _
        // Predicated region
        $region49: #{tpu_custom_call.1} parent=11 // pred_check
          %p470 = pneg %p266
        $region50: #{tpu_custom_call.1} parent=11 // pred_check_branch
          %472 = sbr.rel (%p470) target = $region52
        $region51: #{tpu_custom_call.1} parent=11 // pred_region
          _
        $region52: #{tpu_custom_call.1} parent=11 // pred_fallthru
          _
        // Predicated region
        $region53: #{tpu_custom_call.1} parent=11 // pred_check
          %p473 = pneg %p287
        $region54: #{tpu_custom_call.1} parent=11 // pred_check_branch
          %475 = sbr.rel (%p473) target = $region56
        $region55: #{tpu_custom_call.1} parent=11 // pred_region
          %s477 = ssub.s32 1024, 1024
          %478 = vsyncadd [#allocation6], %s477
          %s479 = sshll.u32 [#allocation7], 4
          %s480 = int_to_ptr.vmem [resolvable:$true] %s479
          %485 = dma.hbm_to_vmem [thread:$0]  %s11, 1024, %s480, [#allocation6], 128, 128, 8
        $region56: #{tpu_custom_call.1} parent=11 // pred_fallthru
          _
        // Predicated region
        $region57: #{tpu_custom_call.1} parent=11 // pred_check
          %p486 = pneg %p308
        $region58: #{tpu_custom_call.1} parent=11 // pred_check_branch
          %488 = sbr.rel (%p486) target = $region60
        $region59: #{tpu_custom_call.1} parent=11 // pred_region
          _
        $region60: #{tpu_custom_call.1} parent=11 // pred_fallthru
          _
        // Predicated region
        $region61: #{tpu_custom_call.1} parent=11 // pred_check
          %p489 = pneg %p329
        $region62: #{tpu_custom_call.1} parent=11 // pred_check_branch
          %491 = sbr.rel (%p489) target = $region64
        $region63: #{tpu_custom_call.1} parent=11 // pred_region
          _
        $region64: #{tpu_custom_call.1} parent=11 // pred_fallthru
          _
        // Predicated region
        $region65: #{tpu_custom_call.1} parent=11 // pred_check
          %p492 = pneg %p350
        $region66: #{tpu_custom_call.1} parent=11 // pred_check_branch
          %494 = sbr.rel (%p492) target = $region68
        $region67: #{tpu_custom_call.1} parent=11 // pred_region
          _
        $region68: #{tpu_custom_call.1} parent=11 // pred_fallthru
          _
        // Predicated region
        $region69: #{tpu_custom_call.1} parent=11 // pred_check
          %p495 = pneg %p371
        $region70: #{tpu_custom_call.1} parent=11 // pred_check_branch
          %497 = sbr.rel (%p495) target = $region72
        $region71: #{tpu_custom_call.1} parent=11 // pred_region
          _
        $region72: #{tpu_custom_call.1} parent=11 // pred_fallthru
          _
        // Predicated region
        $region73: #{tpu_custom_call.1} parent=11 // pred_check
          %p498 = pneg %p392
        $region74: #{tpu_custom_call.1} parent=11 // pred_check_branch
          %500 = sbr.rel (%p498) target = $region76
        $region75: #{tpu_custom_call.1} parent=11 // pred_region
          _
        $region76: #{tpu_custom_call.1} parent=11 // pred_fallthru
          _
      $region12: #{tpu_custom_call.1} parent=5 // pred_fallthru
        _
      %p501 = scmp.lt.s32.totalorder %s30, 2
      // Predicated region
      $region77: #{tpu_custom_call.1} parent=5 // pred_check
        %p502 = pneg %p501
      $region78: #{tpu_custom_call.1} parent=5 // pred_check_branch
        %504 = sbr.rel (%p502) target = $region80
      $region79: #{tpu_custom_call.1} parent=5 // pred_region
        // Predicated region
        $region81: #{tpu_custom_call.1} parent=79 // pred_check
          %p505 = pneg %p50
        $region82: #{tpu_custom_call.1} parent=79 // pred_check_branch
          %507 = sbr.rel (%p505) target = $region84
        $region83: #{tpu_custom_call.1} parent=79 // pred_region
          %s508 = sand.u32 %s40, 1
          %s509 = scalar_lea.sflag [#allocation3], %s508
          %s510 = sand.u32 %s40, 1
          %s511 = smul.addr %s510, 16
          %s512 = scalar_lea.vmem [#allocation2], %s511
          %s514 = ssub.s32 256, 256
          %515 = vsyncadd %s509, %s514
          %s516 = smul.addr %s30, 2
          %s517 = smul.addr %s516, 128
          %s518 = scalar_lea.hbm %s0, %s517
          %s519 = sshll.u32 %s512, 4
          %s520 = int_to_ptr.vmem [resolvable:$true] %s519
          %525 = dma.hbm_to_vmem [thread:$0]  %s518, 256, %s520, %s509, 128, 128, 8
        $region84: #{tpu_custom_call.1} parent=79 // pred_fallthru
          _
      $region80: #{tpu_custom_call.1} parent=5 // pred_fallthru
        _
      %p526 = scmp.le.s32.totalorder 1, %s30
      %p527 = scmp.lt.s32.totalorder %s30, 3
      %p528 = pnand %p526, %p527
      %p529 = pneg %p528
      // Predicated region
      $region85: #{tpu_custom_call.1} parent=5 // pred_check
        _
      $region86: #{tpu_custom_call.1} parent=5 // pred_check_branch
        %531 = sbr.rel (%p528) target = $region88
      $region87: #{tpu_custom_call.1} parent=5 // pred_region
        %s532 = ssub.s32 %s30, 1
        %s533 = sand.u32 %s43, 1
        %s534 = scalar_lea.sflag [#allocation3], %s533
        %s535 = sand.u32 %s43, 1
        %s536 = smul.addr %s535, 16
        %s537 = scalar_lea.vmem [#allocation2], %s536
        // Predicated region
        $region89: #{tpu_custom_call.1} parent=87 // pred_check
          %p538 = pneg %p56
        $region90: #{tpu_custom_call.1} parent=87 // pred_check_branch
          %540 = sbr.rel (%p538) target = $region92
        $region91: #{tpu_custom_call.1} parent=87 // pred_region
          %541 = dma.done %s534, 256
        $region92: #{tpu_custom_call.1} parent=87 // pred_fallthru
          _
        // Predicated region
        $region93: #{tpu_custom_call.1} parent=87 // pred_check
          %p542 = pneg %p203
        $region94: #{tpu_custom_call.1} parent=87 // pred_check_branch
          %544 = sbr.rel (%p542) target = $region96
        $region95: #{tpu_custom_call.1} parent=87 // pred_region
          %545 = dma.done [#allocation6], 1024
        $region96: #{tpu_custom_call.1} parent=87 // pred_fallthru
          _
        // Predicated region
        $region97: #{tpu_custom_call.1} parent=87 // pred_check
          %p546 = pneg %p287
        $region98: #{tpu_custom_call.1} parent=87 // pred_check_branch
          %548 = sbr.rel (%p546) target = $region100
        $region99: #{tpu_custom_call.1} parent=87 // pred_region
          %549 = dma.done [#allocation6], 1024
        $region100: #{tpu_custom_call.1} parent=87 // pred_fallthru
          _
        %s550 = sand.u32 %s43, 1
        %s551 = scalar_lea.sflag [#allocation3], %s550
        %s552 = sand.u32 %s43, 1
        %s553 = smul.addr %s552, 16
        %s554 = scalar_lea.vmem [#allocation2], %s553
        %p555 = pneg %p56
        %p556 = pneg %p53
        %p557 = pneg %p77
        %p558 = pneg %p74
        %p559 = pneg %p98
        %p560 = pneg %p95
        %p561 = pneg %p119
        %p562 = pneg %p116
        %p563 = pneg %p140
        %p564 = pneg %p137
        %p565 = pneg %p161
        %p566 = pneg %p158
        %p567 = pneg %p182
        %p568 = pneg %p179
        %p569 = pneg %p203
        %p570 = pneg %p200
        %p571 = pneg %p224
        %p572 = pneg %p221
        %p573 = pneg %p245
        %p574 = pneg %p242
        %p575 = pneg %p266
        %p576 = pneg %p263
        %p577 = pneg %p287
        %p578 = pneg %p284
        %p579 = pneg %p308
        %p580 = pneg %p305
        %p581 = pneg %p329
        %p582 = pneg %p326
        %p583 = pneg %p350
        %p584 = pneg %p347
        %p585 = pneg %p371
        %p586 = pneg %p368
        %p587 = pneg %p392
        %p588 = pneg %p389
        %p589 = pneg %p418
        %p590 = pneg %p415
        %s591 = sand.u32 %s405, 1
        %s592 = scalar_lea.sflag [#allocation4], %s591
        %s593 = sand.u32 %s405, 1
        %s594 = smul.addr %s593, 16
        %s595 = scalar_lea.vmem [#allocation8], %s594
        %v596 = vld [vmem:[%s537] sm:$0xff]
        %v597 = vld [vmem:[%s537 + $0x8] sm:$0xff]
        %v598 = vld [vmem:[%s1] sm:$0xff]
        %v599 = vld [vmem:[%s1 + $0x8] sm:$0xff]
        %v600 = vld [vmem:[%s1 + $0x10] sm:$0xff]
        %v601 = vld [vmem:[%s1 + $0x18] sm:$0xff]
        %v602 = vld [vmem:[%s1 + $0x20] sm:$0xff]
        %v603 = vld [vmem:[%s1 + $0x28] sm:$0xff]
        %v604 = vld [vmem:[%s1 + $0x30] sm:$0xff]
        %v605 = vld [vmem:[%s1 + $0x38] sm:$0xff]
        %v606 = vld [vmem:[%s4] sm:$0x1]
        %v608 = vlaneseq
        %v609 = vshrl.u32 %v608, 7
        %v610 = vsub.s32 0, %v609
        %v611 = vrot.slane %v606, %v610
        %vm613 = vcmask 523264
        %v615 = vsel %vm613, %v596, 0
        %v618 = vsel %vm613, %v597, 0
        %620 = vmatprep.subr.mxu0 0.0
        %621 = vmatpush1.msra.mxu0 0.0
        %622 = vmatprep.subr.mxu0 0.0
        %623 = vmatpush1.msra.mxu0 0.0
        %624 = vmatprep.subr.mxu0 0.0
        %625 = vmatpush1.msra.mxu0 0.0
        %626 = vmatprep.subr.mxu0 0.0
        %627 = vmatpush1.msra.mxu0 0.0
        %628 = vmatprep.subr.mxu0 0.0
        %629 = vmatpush1.msra.mxu0 0.0
        %630 = vmatprep.subr.mxu0 0.0
        %631 = vmatpush1.msra.mxu0 0.0
        %632 = vmatprep.subr.mxu0 0.0
        %633 = vmatpush1.msra.mxu0 0.0
        %634 = vmatprep.subr.mxu0 0.0
        %635 = vmatpush1.msra.mxu0 0.0
        %636 = vmatprep.subr.mxu0 0.0
        %637 = vmatpush1.msra.mxu0 %v605
        %638 = vmatprep.subr.mxu0 0.0
        %639 = vmatpush1.msra.mxu0 %v604
        %640 = vmatprep.subr.mxu0 0.0
        %641 = vmatpush1.msra.mxu0 %v603
        %642 = vmatprep.subr.mxu0 0.0
        %643 = vmatpush1.msra.mxu0 %v602
        %644 = vmatprep.subr.mxu0 0.0
        %645 = vmatpush1.msra.mxu0 %v601
        %646 = vmatprep.subr.mxu0 0.0
        %647 = vmatpush1.msra.mxu0 %v600
        %648 = vmatprep.subr.mxu0 0.0
        %649 = vmatpush1.msra.mxu0 %v599
        %650 = vmatprep.subr.mxu0 0.0
        %651 = vmatpush1.msra.mxu0 %v598
        %652 = vmatprep.subr.mxu0 0.0
        %653 = vmatpush2.msra.mxu0 0.0
        %654 = vmatprep.subr.mxu0 0.0
        %655 = vmatpush2.msra.mxu0 0.0
        %656 = vmatprep.subr.mxu0 0.0
        %657 = vmatpush2.msra.mxu0 0.0
        %658 = vmatprep.subr.mxu0 0.0
        %659 = vmatpush2.msra.mxu0 0.0
        %660 = vmatprep.subr.mxu0 0.0
        %661 = vmatpush2.msra.mxu0 0.0
        %662 = vmatprep.subr.mxu0 0.0
        %663 = vmatpush2.msra.mxu0 0.0
        %664 = vmatprep.subr.mxu0 0.0
        %665 = vmatpush2.msra.mxu0 0.0
        %666 = vmatprep.subr.mxu0 0.0
        %667 = vmatpush2.msra.mxu0 0.0
        %668 = vmatprep.subr.mxu0 0.0
        %669 = vmatpush2.msra.mxu0 0.0
        %670 = vmatprep.subr.mxu0 0.0
        %671 = vmatpush2.msra.mxu0 0.0
        %672 = vmatprep.subr.mxu0 0.0
        %673 = vmatpush2.msra.mxu0 0.0
        %674 = vmatprep.subr.mxu0 0.0
        %675 = vmatpush2.msra.mxu0 0.0
        %676 = vmatprep.subr.mxu0 0.0
        %677 = vmatpush2.msra.mxu0 0.0
        %678 = vmatprep.subr.mxu0 0.0
        %679 = vmatpush2.msra.mxu0 0.0
        %680 = vmatprep.subr.mxu0 0.0
        %681 = vmatpush2.msra.mxu0 0.0
        %682 = vmatprep.subr.mxu0 0.0
        %683 = vmatpush2.msra.mxu0 0.0
        %684 = vmatprep.mubr.f32.mxu0 0.0
        %685 = vmatmul.mubr.f32.gmra.mxu0 %v615
        %v686 = vpop.f32.mrf.mxu0
        %v687 = vadd.f32 %v611, %v686
        %v688 = vpop.f32.mrf.mxu0
        %689 = vmatprep.mubr.f32.mxu0 0.0
        %690 = vmatmul.mubr.f32.gmra.mxu0 %v618
        %v691 = vpop.f32.mrf.mxu0
        %v692 = vadd.f32 %v611, %v691
        %v693 = vpop.f32.mrf.mxu0
        %694 = vdwg.mxu0
        %v695 = vld [vmem:[%s2] sm:$0xff]
        %v696 = vld [vmem:[%s2 + $0x8] sm:$0xff]
        %v697 = vld [vmem:[%s2 + $0x10] sm:$0xff]
        %v698 = vld [vmem:[%s2 + $0x18] sm:$0xff]
        %v699 = vld [vmem:[%s2 + $0x20] sm:$0xff]
        %v700 = vld [vmem:[%s2 + $0x28] sm:$0xff]
        %v701 = vld [vmem:[%s2 + $0x30] sm:$0xff]
        %v702 = vld [vmem:[%s2 + $0x38] sm:$0xff]
        %v703 = vld [vmem:[%s5] sm:$0x1]
        %v705 = vlaneseq
        %v706 = vshrl.u32 %v705, 7
        %v707 = vsub.s32 0, %v706
        %v708 = vrot.slane %v703, %v707
        %710 = vmatprep.subr.mxu0 0.0
        %711 = vmatpush1.msra.mxu0 0.0
        %712 = vmatprep.subr.mxu0 0.0
        %713 = vmatpush1.msra.mxu0 0.0
        %714 = vmatprep.subr.mxu0 0.0
        %715 = vmatpush1.msra.mxu0 0.0
        %716 = vmatprep.subr.mxu0 0.0
        %717 = vmatpush1.msra.mxu0 0.0
        %718 = vmatprep.subr.mxu0 0.0
        %719 = vmatpush1.msra.mxu0 0.0
        %720 = vmatprep.subr.mxu0 0.0
        %721 = vmatpush1.msra.mxu0 0.0
        %722 = vmatprep.subr.mxu0 0.0
        %723 = vmatpush1.msra.mxu0 0.0
        %724 = vmatprep.subr.mxu0 0.0
        %725 = vmatpush1.msra.mxu0 0.0
        %726 = vmatprep.subr.mxu0 0.0
        %727 = vmatpush1.msra.mxu0 %v702
        %728 = vmatprep.subr.mxu0 0.0
        %729 = vmatpush1.msra.mxu0 %v701
        %730 = vmatprep.subr.mxu0 0.0
        %731 = vmatpush1.msra.mxu0 %v700
        %732 = vmatprep.subr.mxu0 0.0
        %733 = vmatpush1.msra.mxu0 %v699
        %734 = vmatprep.subr.mxu0 0.0
        %735 = vmatpush1.msra.mxu0 %v698
        %736 = vmatprep.subr.mxu0 0.0
        %737 = vmatpush1.msra.mxu0 %v697
        %738 = vmatprep.subr.mxu0 0.0
        %739 = vmatpush1.msra.mxu0 %v696
        %740 = vmatprep.subr.mxu0 0.0
        %741 = vmatpush1.msra.mxu0 %v695
        %742 = vmatprep.subr.mxu0 0.0
        %743 = vmatpush2.msra.mxu0 0.0
        %744 = vmatprep.subr.mxu0 0.0
        %745 = vmatpush2.msra.mxu0 0.0
        %746 = vmatprep.subr.mxu0 0.0
        %747 = vmatpush2.msra.mxu0 0.0
        %748 = vmatprep.subr.mxu0 0.0
        %749 = vmatpush2.msra.mxu0 0.0
        %750 = vmatprep.subr.mxu0 0.0
        %751 = vmatpush2.msra.mxu0 0.0
        %752 = vmatprep.subr.mxu0 0.0
        %753 = vmatpush2.msra.mxu0 0.0
        %754 = vmatprep.subr.mxu0 0.0
        %755 = vmatpush2.msra.mxu0 0.0
        %756 = vmatprep.subr.mxu0 0.0
        %757 = vmatpush2.msra.mxu0 0.0
        %758 = vmatprep.subr.mxu0 0.0
        %759 = vmatpush2.msra.mxu0 0.0
        %760 = vmatprep.subr.mxu0 0.0
        %761 = vmatpush2.msra.mxu0 0.0
        %762 = vmatprep.subr.mxu0 0.0
        %763 = vmatpush2.msra.mxu0 0.0
        %764 = vmatprep.subr.mxu0 0.0
        %765 = vmatpush2.msra.mxu0 0.0
        %766 = vmatprep.subr.mxu0 0.0
        %767 = vmatpush2.msra.mxu0 0.0
        %768 = vmatprep.subr.mxu0 0.0
        %769 = vmatpush2.msra.mxu0 0.0
        %770 = vmatprep.subr.mxu0 0.0
        %771 = vmatpush2.msra.mxu0 0.0
        %772 = vmatprep.subr.mxu0 0.0
        %773 = vmatpush2.msra.mxu0 0.0
        %774 = vmatprep.mubr.f32.mxu0 0.0
        %775 = vmatmul.mubr.f32.gmra.mxu0 %v615
        %v776 = vpop.f32.mrf.mxu0
        %v777 = vadd.f32 %v708, %v776
        %v778 = vpop.f32.mrf.mxu0
        %779 = vmatprep.mubr.f32.mxu0 0.0
        %780 = vmatmul.mubr.f32.gmra.mxu0 %v618
        %v781 = vpop.f32.mrf.mxu0
        %v782 = vadd.f32 %v708, %v781
        %v783 = vpop.f32.mrf.mxu0
        %784 = vdwg.mxu0
        %v785 = vld [vmem:[%s3] sm:$0xff]
        %v786 = vld [vmem:[%s3 + $0x8] sm:$0xff]
        %v787 = vld [vmem:[%s3 + $0x10] sm:$0xff]
        %v788 = vld [vmem:[%s3 + $0x18] sm:$0xff]
        %v789 = vld [vmem:[%s3 + $0x20] sm:$0xff]
        %v790 = vld [vmem:[%s3 + $0x28] sm:$0xff]
        %v791 = vld [vmem:[%s3 + $0x30] sm:$0xff]
        %v792 = vld [vmem:[%s3 + $0x38] sm:$0xff]
        %v793 = vld [vmem:[%s6] sm:$0x1]
        %v795 = vlaneseq
        %v796 = vshrl.u32 %v795, 7
        %v797 = vsub.s32 0, %v796
        %v798 = vrot.slane %v793, %v797
        %800 = vmatprep.subr.mxu0 0.0
        %801 = vmatpush1.msra.mxu0 0.0
        %802 = vmatprep.subr.mxu0 0.0
        %803 = vmatpush1.msra.mxu0 0.0
        %804 = vmatprep.subr.mxu0 0.0
        %805 = vmatpush1.msra.mxu0 0.0
        %806 = vmatprep.subr.mxu0 0.0
        %807 = vmatpush1.msra.mxu0 0.0
        %808 = vmatprep.subr.mxu0 0.0
        %809 = vmatpush1.msra.mxu0 0.0
        %810 = vmatprep.subr.mxu0 0.0
        %811 = vmatpush1.msra.mxu0 0.0
        %812 = vmatprep.subr.mxu0 0.0
        %813 = vmatpush1.msra.mxu0 0.0
        %814 = vmatprep.subr.mxu0 0.0
        %815 = vmatpush1.msra.mxu0 0.0
        %816 = vmatprep.subr.mxu0 0.0
        %817 = vmatpush1.msra.mxu0 %v792
        %818 = vmatprep.subr.mxu0 0.0
        %819 = vmatpush1.msra.mxu0 %v791
        %820 = vmatprep.subr.mxu0 0.0
        %821 = vmatpush1.msra.mxu0 %v790
        %822 = vmatprep.subr.mxu0 0.0
        %823 = vmatpush1.msra.mxu0 %v789
        %824 = vmatprep.subr.mxu0 0.0
        %825 = vmatpush1.msra.mxu0 %v788
        %826 = vmatprep.subr.mxu0 0.0
        %827 = vmatpush1.msra.mxu0 %v787
        %828 = vmatprep.subr.mxu0 0.0
        %829 = vmatpush1.msra.mxu0 %v786
        %830 = vmatprep.subr.mxu0 0.0
        %831 = vmatpush1.msra.mxu0 %v785
        %832 = vmatprep.subr.mxu0 0.0
        %833 = vmatpush2.msra.mxu0 0.0
        %834 = vmatprep.subr.mxu0 0.0
        %835 = vmatpush2.msra.mxu0 0.0
        %836 = vmatprep.subr.mxu0 0.0
        %837 = vmatpush2.msra.mxu0 0.0
        %838 = vmatprep.subr.mxu0 0.0
        %839 = vmatpush2.msra.mxu0 0.0
        %840 = vmatprep.subr.mxu0 0.0
        %841 = vmatpush2.msra.mxu0 0.0
        %842 = vmatprep.subr.mxu0 0.0
        %843 = vmatpush2.msra.mxu0 0.0
        %844 = vmatprep.subr.mxu0 0.0
        %845 = vmatpush2.msra.mxu0 0.0
        %846 = vmatprep.subr.mxu0 0.0
        %847 = vmatpush2.msra.mxu0 0.0
        %848 = vmatprep.subr.mxu0 0.0
        %849 = vmatpush2.msra.mxu0 0.0
        %850 = vmatprep.subr.mxu0 0.0
        %851 = vmatpush2.msra.mxu0 0.0
        %852 = vmatprep.subr.mxu0 0.0
        %853 = vmatpush2.msra.mxu0 0.0
        %854 = vmatprep.subr.mxu0 0.0
        %855 = vmatpush2.msra.mxu0 0.0
        %856 = vmatprep.subr.mxu0 0.0
        %857 = vmatpush2.msra.mxu0 0.0
        %858 = vmatprep.subr.mxu0 0.0
        %859 = vmatpush2.msra.mxu0 0.0
        %860 = vmatprep.subr.mxu0 0.0
        %861 = vmatpush2.msra.mxu0 0.0
        %862 = vmatprep.subr.mxu0 0.0
        %863 = vmatpush2.msra.mxu0 0.0
        %864 = vmatprep.mubr.f32.mxu0 0.0
        %865 = vmatmul.mubr.f32.gmra.mxu0 %v615
        %v866 = vpop.f32.mrf.mxu0
        %v867 = vadd.f32 %v798, %v866
        %v868 = vpop.f32.mrf.mxu0
        %869 = vmatprep.mubr.f32.mxu0 0.0
        %870 = vmatmul.mubr.f32.gmra.mxu0 %v618
        %v871 = vpop.f32.mrf.mxu0
        %v872 = vadd.f32 %v798, %v871
        %v873 = vpop.f32.mrf.mxu0
        %874 = vdwg.mxu0
        %v875 = vmul.f32 %v687, 0.25
        %v876 = vmul.f32 %v692, 0.25
        %vm877 = vcmask 130048
        %v879 = vsel %vm877, %v875, 0
        %v882 = vsel %vm877, %v876, 0
        %v885 = vsel %vm877, %v777, 0
        %v888 = vsel %vm877, %v782, 0
        %890 = vmatprep.subr.mxu0 0.0
        %891 = vmatpush1.xpose.msra.mxu0 0.0
        %892 = vmatprep.subr.mxu0 0.0
        %893 = vmatpush1.xpose.msra.mxu0 0.0
        %894 = vmatprep.subr.mxu0 0.0
        %895 = vmatpush1.xpose.msra.mxu0 0.0
        %896 = vmatprep.subr.mxu0 0.0
        %897 = vmatpush1.xpose.msra.mxu0 0.0
        %898 = vmatprep.subr.mxu0 0.0
        %899 = vmatpush1.xpose.msra.mxu0 0.0
        %900 = vmatprep.subr.mxu0 0.0
        %901 = vmatpush1.xpose.msra.mxu0 0.0
        %902 = vmatprep.subr.mxu0 0.0
        %903 = vmatpush1.xpose.msra.mxu0 0.0
        %904 = vmatprep.subr.mxu0 0.0
        %905 = vmatpush1.xpose.msra.mxu0 0.0
        %906 = vmatprep.subr.mxu0 0.0
        %907 = vmatpush1.xpose.msra.mxu0 0.0
        %908 = vmatprep.subr.mxu0 0.0
        %909 = vmatpush1.xpose.msra.mxu0 0.0
        %910 = vmatprep.subr.mxu0 0.0
        %911 = vmatpush1.xpose.msra.mxu0 0.0
        %912 = vmatprep.subr.mxu0 0.0
        %913 = vmatpush1.xpose.msra.mxu0 0.0
        %914 = vmatprep.subr.mxu0 0.0
        %915 = vmatpush1.xpose.msra.mxu0 0.0
        %916 = vmatprep.subr.mxu0 0.0
        %917 = vmatpush1.xpose.msra.mxu0 0.0
        %918 = vmatprep.subr.mxu0 0.0
        %919 = vmatpush1.xpose.msra.mxu0 %v888
        %920 = vmatprep.subr.mxu0 0.0
        %921 = vmatpush1.xpose.msra.mxu0 %v885
        %922 = vmatprep.subr.mxu0 0.0
        %923 = vmatpush2.xpose.msra.mxu0 0.0
        %924 = vmatprep.subr.mxu0 0.0
        %925 = vmatpush2.xpose.msra.mxu0 0.0
        %926 = vmatprep.subr.mxu0 0.0
        %927 = vmatpush2.xpose.msra.mxu0 0.0
        %928 = vmatprep.subr.mxu0 0.0
        %929 = vmatpush2.xpose.msra.mxu0 0.0
        %930 = vmatprep.subr.mxu0 0.0
        %931 = vmatpush2.xpose.msra.mxu0 0.0
        %932 = vmatprep.subr.mxu0 0.0
        %933 = vmatpush2.xpose.msra.mxu0 0.0
        %934 = vmatprep.subr.mxu0 0.0
        %935 = vmatpush2.xpose.msra.mxu0 0.0
        %936 = vmatprep.subr.mxu0 0.0
        %937 = vmatpush2.xpose.msra.mxu0 0.0
        %938 = vmatprep.subr.mxu0 0.0
        %939 = vmatpush2.xpose.msra.mxu0 0.0
        %940 = vmatprep.subr.mxu0 0.0
        %941 = vmatpush2.xpose.msra.mxu0 0.0
        %942 = vmatprep.subr.mxu0 0.0
        %943 = vmatpush2.xpose.msra.mxu0 0.0
        %944 = vmatprep.subr.mxu0 0.0
        %945 = vmatpush2.xpose.msra.mxu0 0.0
        %946 = vmatprep.subr.mxu0 0.0
        %947 = vmatpush2.xpose.msra.mxu0 0.0
        %948 = vmatprep.subr.mxu0 0.0
        %949 = vmatpush2.xpose.msra.mxu0 0.0
        %950 = vmatprep.subr.mxu0 0.0
        %951 = vmatpush2.xpose.msra.mxu0 0.0
        %952 = vmatprep.subr.mxu0 0.0
        %953 = vmatpush2.xpose.msra.mxu0 0.0
        %954 = vmatprep.mubr.f32.mxu0 0.0
        %955 = vmatmul.mubr.f32.gmra.mxu0 %v879
        %v956 = vpop.f32.mrf.mxu0
        %v957 = vadd.f32 0.0, %v956
        %v958 = vpop.f32.mrf.mxu0
        %959 = vmatprep.mubr.f32.mxu0 0.0
        %960 = vmatmul.mubr.f32.gmra.mxu0 %v882
        %v961 = vpop.f32.mrf.mxu0
        %v962 = vadd.f32 0.0, %v961
        %v963 = vpop.f32.mrf.mxu0
        %964 = vdwg.mxu0
        %v965 = vsel %vm877, %v957, -inf
        %966 = vmax.xlane.f32.xlu0 %v965
        %v967 = vpop.xlane.xlu0 %966
        %v968 = vsel %vm877, %v962, -inf
        %969 = vmax.xlane.f32.xlu0 %v968
        %v970 = vpop.xlane.xlu0 %969
        %v971 = vsub.f32 %v957, %v967
        %v972 = vsub.f32 %v962, %v970
        %v973 = vmul.f32 %v971, 1.442695
        %v974 = vpow.pop %v973
        %v975 = vmul.f32 %v972, 1.442695
        %v976 = vpow.pop %v975
        %v977 = vsel %vm877, %v974, 0.0
        %978 = vadd.xlane.f32.xlu0 %v977
        %v979 = vpop.xlane.xlu0 %978
        %v980 = vsel %vm877, %v976, 0.0
        %981 = vadd.xlane.f32.xlu0 %v980
        %v982 = vpop.xlane.xlu0 %981
        %v983 = vrcp.pop %v979
        %v984 = vmul.f32 %v974, %v983
        %v985 = vrcp.pop %v982
        %v986 = vmul.f32 %v976, %v985
        %v988 = vsel %vm877, %v984, 0
        %v991 = vsel %vm877, %v986, 0
        %993 = vmatprep.subr.mxu0 0.0
        %994 = vmatpush1.msra.mxu0 0.0
        %995 = vmatprep.subr.mxu0 0.0
        %996 = vmatpush1.msra.mxu0 0.0
        %997 = vmatprep.subr.mxu0 0.0
        %998 = vmatpush1.msra.mxu0 0.0
        %999 = vmatprep.subr.mxu0 0.0
        %1000 = vmatpush1.msra.mxu0 0.0
        %1001 = vmatprep.subr.mxu0 0.0
        %1002 = vmatpush1.msra.mxu0 0.0
        %1003 = vmatprep.subr.mxu0 0.0
        %1004 = vmatpush1.msra.mxu0 0.0
        %1005 = vmatprep.subr.mxu0 0.0
        %1006 = vmatpush1.msra.mxu0 0.0
        %1007 = vmatprep.subr.mxu0 0.0
        %1008 = vmatpush1.msra.mxu0 0.0
        %1009 = vmatprep.subr.mxu0 0.0
        %1010 = vmatpush1.msra.mxu0 0.0
        %1011 = vmatprep.subr.mxu0 0.0
        %1012 = vmatpush1.msra.mxu0 0.0
        %1013 = vmatprep.subr.mxu0 0.0
        %1014 = vmatpush1.msra.mxu0 0.0
        %1015 = vmatprep.subr.mxu0 0.0
        %1016 = vmatpush1.msra.mxu0 0.0
        %1017 = vmatprep.subr.mxu0 0.0
        %1018 = vmatpush1.msra.mxu0 0.0
        %1019 = vmatprep.subr.mxu0 0.0
        %1020 = vmatpush1.msra.mxu0 0.0
        %1021 = vmatprep.subr.mxu0 0.0
        %1022 = vmatpush1.msra.mxu0 %v872
        %1023 = vmatprep.subr.mxu0 0.0
        %1024 = vmatpush1.msra.mxu0 %v867
        %1025 = vmatprep.subr.mxu0 0.0
        %1026 = vmatpush2.msra.mxu0 0.0
        %1027 = vmatprep.subr.mxu0 0.0
        %1028 = vmatpush2.msra.mxu0 0.0
        %1029 = vmatprep.subr.mxu0 0.0
        %1030 = vmatpush2.msra.mxu0 0.0
        %1031 = vmatprep.subr.mxu0 0.0
        %1032 = vmatpush2.msra.mxu0 0.0
        %1033 = vmatprep.subr.mxu0 0.0
        %1034 = vmatpush2.msra.mxu0 0.0
        %1035 = vmatprep.subr.mxu0 0.0
        %1036 = vmatpush2.msra.mxu0 0.0
        %1037 = vmatprep.subr.mxu0 0.0
        %1038 = vmatpush2.msra.mxu0 0.0
        %1039 = vmatprep.subr.mxu0 0.0
        %1040 = vmatpush2.msra.mxu0 0.0
        %1041 = vmatprep.subr.mxu0 0.0
        %1042 = vmatpush2.msra.mxu0 0.0
        %1043 = vmatprep.subr.mxu0 0.0
        %1044 = vmatpush2.msra.mxu0 0.0
        %1045 = vmatprep.subr.mxu0 0.0
        %1046 = vmatpush2.msra.mxu0 0.0
        %1047 = vmatprep.subr.mxu0 0.0
        %1048 = vmatpush2.msra.mxu0 0.0
        %1049 = vmatprep.subr.mxu0 0.0
        %1050 = vmatpush2.msra.mxu0 0.0
        %1051 = vmatprep.subr.mxu0 0.0
        %1052 = vmatpush2.msra.mxu0 0.0
        %1053 = vmatprep.subr.mxu0 0.0
        %1054 = vmatpush2.msra.mxu0 0.0
        %1055 = vmatprep.subr.mxu0 0.0
        %1056 = vmatpush2.msra.mxu0 0.0
        %1057 = vmatprep.mubr.f32.mxu0 0.0
        %1058 = vmatmul.mubr.f32.gmra.mxu0 %v988
        %v1059 = vpop.f32.mrf.mxu0
        %v1060 = vadd.f32 0.0, %v1059
        %v1061 = vpop.f32.mrf.mxu0
        %1062 = vmatprep.mubr.f32.mxu0 0.0
        %1063 = vmatmul.mubr.f32.gmra.mxu0 %v991
        %v1064 = vpop.f32.mrf.mxu0
        %v1065 = vadd.f32 0.0, %v1064
        %v1066 = vpop.f32.mrf.mxu0
        %1067 = vdwg.mxu0
        %v1068 = vld [vmem:[#allocation5] sm:$0xff]
        %v1069 = vld [vmem:[#allocation5 + $0x8] sm:$0xff]
        %1070 = vrot.lane.b32.xlu0 %v875, 112
        %v1071 = vpop.permute.xlu0 %1070
        %1072 = vrot.lane.b32.xlu0 %v876, 112
        %v1073 = vpop.permute.xlu0 %1072
        %1074 = vrot.lane.b32.xlu0 %v777, 112
        %v1075 = vpop.permute.xlu0 %1074
        %1076 = vrot.lane.b32.xlu0 %v782, 112
        %v1077 = vpop.permute.xlu0 %1076
        %v1078 = vsel %vm877, %v1071, 0
        %v1080 = vsel %vm877, %v1073, 0
        %v1082 = vsel %vm877, %v1075, 0
        %v1084 = vsel %vm877, %v1077, 0
        %1086 = vmatprep.subr.mxu0 0.0
        %1087 = vmatpush1.xpose.msra.mxu0 0.0
        %1088 = vmatprep.subr.mxu0 0.0
        %1089 = vmatpush1.xpose.msra.mxu0 0.0
        %1090 = vmatprep.subr.mxu0 0.0
        %1091 = vmatpush1.xpose.msra.mxu0 0.0
        %1092 = vmatprep.subr.mxu0 0.0
        %1093 = vmatpush1.xpose.msra.mxu0 0.0
        %1094 = vmatprep.subr.mxu0 0.0
        %1095 = vmatpush1.xpose.msra.mxu0 0.0
        %1096 = vmatprep.subr.mxu0 0.0
        %1097 = vmatpush1.xpose.msra.mxu0 0.0
        %1098 = vmatprep.subr.mxu0 0.0
        %1099 = vmatpush1.xpose.msra.mxu0 0.0
        %1100 = vmatprep.subr.mxu0 0.0
        %1101 = vmatpush1.xpose.msra.mxu0 0.0
        %1102 = vmatprep.subr.mxu0 0.0
        %1103 = vmatpush1.xpose.msra.mxu0 0.0
        %1104 = vmatprep.subr.mxu0 0.0
        %1105 = vmatpush1.xpose.msra.mxu0 0.0
        %1106 = vmatprep.subr.mxu0 0.0
        %1107 = vmatpush1.xpose.msra.mxu0 0.0
        %1108 = vmatprep.subr.mxu0 0.0
        %1109 = vmatpush1.xpose.msra.mxu0 0.0
        %1110 = vmatprep.subr.mxu0 0.0
        %1111 = vmatpush1.xpose.msra.mxu0 0.0
        %1112 = vmatprep.subr.mxu0 0.0
        %1113 = vmatpush1.xpose.msra.mxu0 0.0
        %1114 = vmatprep.subr.mxu0 0.0
        %1115 = vmatpush1.xpose.msra.mxu0 %v1084
        %1116 = vmatprep.subr.mxu0 0.0
        %1117 = vmatpush1.xpose.msra.mxu0 %v1082
        %1118 = vmatprep.subr.mxu0 0.0
        %1119 = vmatpush2.xpose.msra.mxu0 0.0
        %1120 = vmatprep.subr.mxu0 0.0
        %1121 = vmatpush2.xpose.msra.mxu0 0.0
        %1122 = vmatprep.subr.mxu0 0.0
        %1123 = vmatpush2.xpose.msra.mxu0 0.0
        %1124 = vmatprep.subr.mxu0 0.0
        %1125 = vmatpush2.xpose.msra.mxu0 0.0
        %1126 = vmatprep.subr.mxu0 0.0
        %1127 = vmatpush2.xpose.msra.mxu0 0.0
        %1128 = vmatprep.subr.mxu0 0.0
        %1129 = vmatpush2.xpose.msra.mxu0 0.0
        %1130 = vmatprep.subr.mxu0 0.0
        %1131 = vmatpush2.xpose.msra.mxu0 0.0
        %1132 = vmatprep.subr.mxu0 0.0
        %1133 = vmatpush2.xpose.msra.mxu0 0.0
        %1134 = vmatprep.subr.mxu0 0.0
        %1135 = vmatpush2.xpose.msra.mxu0 0.0
        %1136 = vmatprep.subr.mxu0 0.0
        %1137 = vmatpush2.xpose.msra.mxu0 0.0
        %1138 = vmatprep.subr.mxu0 0.0
        %1139 = vmatpush2.xpose.msra.mxu0 0.0
        %1140 = vmatprep.subr.mxu0 0.0
        %1141 = vmatpush2.xpose.msra.mxu0 0.0
        %1142 = vmatprep.subr.mxu0 0.0
        %1143 = vmatpush2.xpose.msra.mxu0 0.0
        %1144 = vmatprep.subr.mxu0 0.0
        %1145 = vmatpush2.xpose.msra.mxu0 0.0
        %1146 = vmatprep.subr.mxu0 0.0
        %1147 = vmatpush2.xpose.msra.mxu0 0.0
        %1148 = vmatprep.subr.mxu0 0.0
        %1149 = vmatpush2.xpose.msra.mxu0 0.0
        %1150 = vmatprep.mubr.f32.mxu0 0.0
        %1151 = vmatmul.mubr.f32.gmra.mxu0 %v1078
        %v1152 = vpop.f32.mrf.mxu0
        %v1153 = vadd.f32 0.0, %v1152
        %v1154 = vpop.f32.mrf.mxu0
        %1155 = vmatprep.mubr.f32.mxu0 0.0
        %1156 = vmatmul.mubr.f32.gmra.mxu0 %v1080
        %v1157 = vpop.f32.mrf.mxu0
        %v1158 = vadd.f32 0.0, %v1157
        %v1159 = vpop.f32.mrf.mxu0
        %1160 = vdwg.mxu0
        %v1161 = vsel %vm877, %v1153, -inf
        %1162 = vmax.xlane.f32.xlu0 %v1161
        %v1163 = vpop.xlane.xlu0 %1162
        %v1164 = vsel %vm877, %v1158, -inf
        %1165 = vmax.xlane.f32.xlu0 %v1164
        %v1166 = vpop.xlane.xlu0 %1165
        %v1167 = vsub.f32 %v1153, %v1163
        %v1168 = vsub.f32 %v1158, %v1166
        %v1169 = vmul.f32 %v1167, 1.442695
        %v1170 = vpow.pop %v1169
        %v1171 = vmul.f32 %v1168, 1.442695
        %v1172 = vpow.pop %v1171
        %v1173 = vsel %vm877, %v1170, 0.0
        %1174 = vadd.xlane.f32.xlu0 %v1173
        %v1175 = vpop.xlane.xlu0 %1174
        %v1176 = vsel %vm877, %v1172, 0.0
        %1177 = vadd.xlane.f32.xlu0 %v1176
        %v1178 = vpop.xlane.xlu0 %1177
        %v1179 = vrcp.pop %v1175
        %v1180 = vmul.f32 %v1170, %v1179
        %v1181 = vrcp.pop %v1178
        %v1182 = vmul.f32 %v1172, %v1181
        %1185 = vrot.lane.b32.xlu0 %v867, 112
        %v1186 = vpop.permute.xlu0 %1185
        %1187 = vrot.lane.b32.xlu0 %v872, 112
        %v1188 = vpop.permute.xlu0 %1187
        %v1192 = vsel %vm877, %v1180, 0
        %v1195 = vsel %vm877, %v1182, 0
        %1197 = vmatprep.subr.mxu0 0.0
        %1198 = vmatpush1.msra.mxu0 0.0
        %1199 = vmatprep.subr.mxu0 0.0
        %1200 = vmatpush1.msra.mxu0 0.0
        %1201 = vmatprep.subr.mxu0 0.0
        %1202 = vmatpush1.msra.mxu0 0.0
        %1203 = vmatprep.subr.mxu0 0.0
        %1204 = vmatpush1.msra.mxu0 0.0
        %1205 = vmatprep.subr.mxu0 0.0
        %1206 = vmatpush1.msra.mxu0 0.0
        %1207 = vmatprep.subr.mxu0 0.0
        %1208 = vmatpush1.msra.mxu0 0.0
        %1209 = vmatprep.subr.mxu0 0.0
        %1210 = vmatpush1.msra.mxu0 0.0
        %1211 = vmatprep.subr.mxu0 0.0
        %1212 = vmatpush1.msra.mxu0 0.0
        %1213 = vmatprep.subr.mxu0 0.0
        %1214 = vmatpush1.msra.mxu0 0.0
        %1215 = vmatprep.subr.mxu0 0.0
        %1216 = vmatpush1.msra.mxu0 0.0
        %1217 = vmatprep.subr.mxu0 0.0
        %1218 = vmatpush1.msra.mxu0 0.0
        %1219 = vmatprep.subr.mxu0 0.0
        %1220 = vmatpush1.msra.mxu0 0.0
        %1221 = vmatprep.subr.mxu0 0.0
        %1222 = vmatpush1.msra.mxu0 0.0
        %1223 = vmatprep.subr.mxu0 0.0
        %1224 = vmatpush1.msra.mxu0 0.0
        %1225 = vmatprep.subr.mxu0 0.0
        %1226 = vmatpush1.msra.mxu0 %v1188
        %1227 = vmatprep.subr.mxu0 0.0
        %1228 = vmatpush1.msra.mxu0 %v1186
        %1229 = vmatprep.subr.mxu0 0.0
        %1230 = vmatpush2.msra.mxu0 0.0
        %1231 = vmatprep.subr.mxu0 0.0
        %1232 = vmatpush2.msra.mxu0 0.0
        %1233 = vmatprep.subr.mxu0 0.0
        %1234 = vmatpush2.msra.mxu0 0.0
        %1235 = vmatprep.subr.mxu0 0.0
        %1236 = vmatpush2.msra.mxu0 0.0
        %1237 = vmatprep.subr.mxu0 0.0
        %1238 = vmatpush2.msra.mxu0 0.0
        %1239 = vmatprep.subr.mxu0 0.0
        %1240 = vmatpush2.msra.mxu0 0.0
        %1241 = vmatprep.subr.mxu0 0.0
        %1242 = vmatpush2.msra.mxu0 0.0
        %1243 = vmatprep.subr.mxu0 0.0
        %1244 = vmatpush2.msra.mxu0 0.0
        %1245 = vmatprep.subr.mxu0 0.0
        %1246 = vmatpush2.msra.mxu0 0.0
        %1247 = vmatprep.subr.mxu0 0.0
        %1248 = vmatpush2.msra.mxu0 0.0
        %1249 = vmatprep.subr.mxu0 0.0
        %1250 = vmatpush2.msra.mxu0 0.0
        %1251 = vmatprep.subr.mxu0 0.0
        %1252 = vmatpush2.msra.mxu0 0.0
        %1253 = vmatprep.subr.mxu0 0.0
        %1254 = vmatpush2.msra.mxu0 0.0
        %1255 = vmatprep.subr.mxu0 0.0
        %1256 = vmatpush2.msra.mxu0 0.0
        %1257 = vmatprep.subr.mxu0 0.0
        %1258 = vmatpush2.msra.mxu0 0.0
        %1259 = vmatprep.subr.mxu0 0.0
        %1260 = vmatpush2.msra.mxu0 0.0
        %1261 = vmatprep.mubr.f32.mxu0 0.0
        %1262 = vmatmul.mubr.f32.gmra.mxu0 %v1192
        %v1263 = vpop.f32.mrf.mxu0
        %v1264 = vadd.f32 0.0, %v1263
        %v1265 = vpop.f32.mrf.mxu0
        %1266 = vmatprep.mubr.f32.mxu0 0.0
        %1267 = vmatmul.mubr.f32.gmra.mxu0 %v1195
        %v1268 = vpop.f32.mrf.mxu0
        %v1269 = vadd.f32 0.0, %v1268
        %v1270 = vpop.f32.mrf.mxu0
        %1271 = vdwg.mxu0
        %v1272 = vld [vmem:[#allocation5 + $0x10] sm:$0xff]
        %v1273 = vld [vmem:[#allocation5 + $0x18] sm:$0xff]
        %v1275 = vsel %vm877, %v1264, 0
        %v1278 = vsel %vm877, %v1269, 0
        %1280 = vmatprep.subr.mxu0 0.0
        %1281 = vmatpush1.msra.mxu0 0.0
        %1282 = vmatprep.subr.mxu0 0.0
        %1283 = vmatpush1.msra.mxu0 0.0
        %1284 = vmatprep.subr.mxu0 0.0
        %1285 = vmatpush1.msra.mxu0 0.0
        %1286 = vmatprep.subr.mxu0 0.0
        %1287 = vmatpush1.msra.mxu0 0.0
        %1288 = vmatprep.subr.mxu0 0.0
        %1289 = vmatpush1.msra.mxu0 0.0
        %1290 = vmatprep.subr.mxu0 0.0
        %1291 = vmatpush1.msra.mxu0 0.0
        %1292 = vmatprep.subr.mxu0 0.0
        %1293 = vmatpush1.msra.mxu0 0.0
        %1294 = vmatprep.subr.mxu0 0.0
        %1295 = vmatpush1.msra.mxu0 0.0
        %1296 = vmatprep.subr.mxu0 0.0
        %1297 = vmatpush1.msra.mxu0 0.0
        %1298 = vmatprep.subr.mxu0 0.0
        %1299 = vmatpush1.msra.mxu0 0.0
        %1300 = vmatprep.subr.mxu0 0.0
        %1301 = vmatpush1.msra.mxu0 0.0
        %1302 = vmatprep.subr.mxu0 0.0
        %1303 = vmatpush1.msra.mxu0 0.0
        %1304 = vmatprep.subr.mxu0 0.0
        %1305 = vmatpush1.msra.mxu0 0.0
        %1306 = vmatprep.subr.mxu0 0.0
        %1307 = vmatpush1.msra.mxu0 0.0
        %1308 = vmatprep.subr.mxu0 0.0
        %1309 = vmatpush1.msra.mxu0 %v1273
        %1310 = vmatprep.subr.mxu0 0.0
        %1311 = vmatpush1.msra.mxu0 %v1272
        %1312 = vmatprep.subr.mxu0 0.0
        %1313 = vmatpush2.msra.mxu0 0.0
        %1314 = vmatprep.subr.mxu0 0.0
        %1315 = vmatpush2.msra.mxu0 0.0
        %1316 = vmatprep.subr.mxu0 0.0
        %1317 = vmatpush2.msra.mxu0 0.0
        %1318 = vmatprep.subr.mxu0 0.0
        %1319 = vmatpush2.msra.mxu0 0.0
        %1320 = vmatprep.subr.mxu0 0.0
        %1321 = vmatpush2.msra.mxu0 0.0
        %1322 = vmatprep.subr.mxu0 0.0
        %1323 = vmatpush2.msra.mxu0 0.0
        %1324 = vmatprep.subr.mxu0 0.0
        %1325 = vmatpush2.msra.mxu0 0.0
        %1326 = vmatprep.subr.mxu0 0.0
        %1327 = vmatpush2.msra.mxu0 0.0
        %1328 = vmatprep.subr.mxu0 0.0
        %1329 = vmatpush2.msra.mxu0 0.0
        %1330 = vmatprep.subr.mxu0 0.0
        %1331 = vmatpush2.msra.mxu0 0.0
        %1332 = vmatprep.subr.mxu0 0.0
        %1333 = vmatpush2.msra.mxu0 0.0
        %1334 = vmatprep.subr.mxu0 0.0
        %1335 = vmatpush2.msra.mxu0 0.0
        %1336 = vmatprep.subr.mxu0 0.0
        %1337 = vmatpush2.msra.mxu0 0.0
        %1338 = vmatprep.subr.mxu0 0.0
        %1339 = vmatpush2.msra.mxu0 0.0
        %1340 = vmatprep.subr.mxu0 0.0
        %1341 = vmatpush2.msra.mxu0 0.0
        %1342 = vmatprep.subr.mxu0 0.0
        %1343 = vmatpush2.msra.mxu0 0.0
        %1344 = vmatprep.mubr.f32.mxu0 0.0
        %1345 = vmatmul.mubr.f32.gmra.mxu0 %v1275
        %v1346 = vpop.f32.mrf.mxu0
        %v1347 = vadd.f32 0.0, %v1346
        %v1348 = vpop.f32.mrf.mxu0
        %1349 = vmatprep.mubr.f32.mxu0 0.0
        %1350 = vmatmul.mubr.f32.gmra.mxu0 %v1278
        %v1351 = vpop.f32.mrf.mxu0
        %v1352 = vadd.f32 0.0, %v1351
        %v1353 = vpop.f32.mrf.mxu0
        %1354 = vdwg.mxu0
        %v1356 = vsel %vm877, %v1060, 0
        %v1359 = vsel %vm877, %v1065, 0
        %1361 = vmatprep.subr.mxu0 0.0
        %1362 = vmatpush1.msra.mxu0 0.0
        %1363 = vmatprep.subr.mxu0 0.0
        %1364 = vmatpush1.msra.mxu0 0.0
        %1365 = vmatprep.subr.mxu0 0.0
        %1366 = vmatpush1.msra.mxu0 0.0
        %1367 = vmatprep.subr.mxu0 0.0
        %1368 = vmatpush1.msra.mxu0 0.0
        %1369 = vmatprep.subr.mxu0 0.0
        %1370 = vmatpush1.msra.mxu0 0.0
        %1371 = vmatprep.subr.mxu0 0.0
        %1372 = vmatpush1.msra.mxu0 0.0
        %1373 = vmatprep.subr.mxu0 0.0
        %1374 = vmatpush1.msra.mxu0 0.0
        %1375 = vmatprep.subr.mxu0 0.0
        %1376 = vmatpush1.msra.mxu0 0.0
        %1377 = vmatprep.subr.mxu0 0.0
        %1378 = vmatpush1.msra.mxu0 0.0
        %1379 = vmatprep.subr.mxu0 0.0
        %1380 = vmatpush1.msra.mxu0 0.0
        %1381 = vmatprep.subr.mxu0 0.0
        %1382 = vmatpush1.msra.mxu0 0.0
        %1383 = vmatprep.subr.mxu0 0.0
        %1384 = vmatpush1.msra.mxu0 0.0
        %1385 = vmatprep.subr.mxu0 0.0
        %1386 = vmatpush1.msra.mxu0 0.0
        %1387 = vmatprep.subr.mxu0 0.0
        %1388 = vmatpush1.msra.mxu0 0.0
        %1389 = vmatprep.subr.mxu0 0.0
        %1390 = vmatpush1.msra.mxu0 %v1069
        %1391 = vmatprep.subr.mxu0 0.0
        %1392 = vmatpush1.msra.mxu0 %v1068
        %1393 = vmatprep.subr.mxu0 0.0
        %1394 = vmatpush2.msra.mxu0 0.0
        %1395 = vmatprep.subr.mxu0 0.0
        %1396 = vmatpush2.msra.mxu0 0.0
        %1397 = vmatprep.subr.mxu0 0.0
        %1398 = vmatpush2.msra.mxu0 0.0
        %1399 = vmatprep.subr.mxu0 0.0
        %1400 = vmatpush2.msra.mxu0 0.0
        %1401 = vmatprep.subr.mxu0 0.0
        %1402 = vmatpush2.msra.mxu0 0.0
        %1403 = vmatprep.subr.mxu0 0.0
        %1404 = vmatpush2.msra.mxu0 0.0
        %1405 = vmatprep.subr.mxu0 0.0
        %1406 = vmatpush2.msra.mxu0 0.0
        %1407 = vmatprep.subr.mxu0 0.0
        %1408 = vmatpush2.msra.mxu0 0.0
        %1409 = vmatprep.subr.mxu0 0.0
        %1410 = vmatpush2.msra.mxu0 0.0
        %1411 = vmatprep.subr.mxu0 0.0
        %1412 = vmatpush2.msra.mxu0 0.0
        %1413 = vmatprep.subr.mxu0 0.0
        %1414 = vmatpush2.msra.mxu0 0.0
        %1415 = vmatprep.subr.mxu0 0.0
        %1416 = vmatpush2.msra.mxu0 0.0
        %1417 = vmatprep.subr.mxu0 0.0
        %1418 = vmatpush2.msra.mxu0 0.0
        %1419 = vmatprep.subr.mxu0 0.0
        %1420 = vmatpush2.msra.mxu0 0.0
        %1421 = vmatprep.subr.mxu0 0.0
        %1422 = vmatpush2.msra.mxu0 0.0
        %1423 = vmatprep.subr.mxu0 0.0
        %1424 = vmatpush2.msra.mxu0 0.0
        %1425 = vmatprep.mubr.f32.mxu0 0.0
        %1426 = vmatmul.mubr.f32.gmra.mxu0 %v1356
        %v1427 = vpop.f32.mrf.mxu0
        %v1428 = vadd.f32 %v1347, %v1427
        %v1429 = vpop.f32.mrf.mxu0
        %1430 = vmatprep.mubr.f32.mxu0 0.0
        %1431 = vmatmul.mubr.f32.gmra.mxu0 %v1359
        %v1432 = vpop.f32.mrf.mxu0
        %v1433 = vadd.f32 %v1352, %v1432
        %v1434 = vpop.f32.mrf.mxu0
        %1435 = vdwg.mxu0
        %1436 = vrot.lane.b32.xlu0 %v875, 96
        %v1437 = vpop.permute.xlu0 %1436
        %1438 = vrot.lane.b32.xlu0 %v876, 96
        %v1439 = vpop.permute.xlu0 %1438
        %1440 = vrot.lane.b32.xlu0 %v777, 96
        %v1441 = vpop.permute.xlu0 %1440
        %1442 = vrot.lane.b32.xlu0 %v782, 96
        %v1443 = vpop.permute.xlu0 %1442
        %v1444 = vsel %vm877, %v1437, 0
        %v1446 = vsel %vm877, %v1439, 0
        %v1448 = vsel %vm877, %v1441, 0
        %v1450 = vsel %vm877, %v1443, 0
        %1452 = vmatprep.subr.mxu0 0.0
        %1453 = vmatpush1.xpose.msra.mxu0 0.0
        %1454 = vmatprep.subr.mxu0 0.0
        %1455 = vmatpush1.xpose.msra.mxu0 0.0
        %1456 = vmatprep.subr.mxu0 0.0
        %1457 = vmatpush1.xpose.msra.mxu0 0.0
        %1458 = vmatprep.subr.mxu0 0.0
        %1459 = vmatpush1.xpose.msra.mxu0 0.0
        %1460 = vmatprep.subr.mxu0 0.0
        %1461 = vmatpush1.xpose.msra.mxu0 0.0
        %1462 = vmatprep.subr.mxu0 0.0
        %1463 = vmatpush1.xpose.msra.mxu0 0.0
        %1464 = vmatprep.subr.mxu0 0.0
        %1465 = vmatpush1.xpose.msra.mxu0 0.0
        %1466 = vmatprep.subr.mxu0 0.0
        %1467 = vmatpush1.xpose.msra.mxu0 0.0
        %1468 = vmatprep.subr.mxu0 0.0
        %1469 = vmatpush1.xpose.msra.mxu0 0.0
        %1470 = vmatprep.subr.mxu0 0.0
        %1471 = vmatpush1.xpose.msra.mxu0 0.0
        %1472 = vmatprep.subr.mxu0 0.0
        %1473 = vmatpush1.xpose.msra.mxu0 0.0
        %1474 = vmatprep.subr.mxu0 0.0
        %1475 = vmatpush1.xpose.msra.mxu0 0.0
        %1476 = vmatprep.subr.mxu0 0.0
        %1477 = vmatpush1.xpose.msra.mxu0 0.0
        %1478 = vmatprep.subr.mxu0 0.0
        %1479 = vmatpush1.xpose.msra.mxu0 0.0
        %1480 = vmatprep.subr.mxu0 0.0
        %1481 = vmatpush1.xpose.msra.mxu0 %v1450
        %1482 = vmatprep.subr.mxu0 0.0
        %1483 = vmatpush1.xpose.msra.mxu0 %v1448
        %1484 = vmatprep.subr.mxu0 0.0
        %1485 = vmatpush2.xpose.msra.mxu0 0.0
        %1486 = vmatprep.subr.mxu0 0.0
        %1487 = vmatpush2.xpose.msra.mxu0 0.0
        %1488 = vmatprep.subr.mxu0 0.0
        %1489 = vmatpush2.xpose.msra.mxu0 0.0
        %1490 = vmatprep.subr.mxu0 0.0
        %1491 = vmatpush2.xpose.msra.mxu0 0.0
        %1492 = vmatprep.subr.mxu0 0.0
        %1493 = vmatpush2.xpose.msra.mxu0 0.0
        %1494 = vmatprep.subr.mxu0 0.0
        %1495 = vmatpush2.xpose.msra.mxu0 0.0
        %1496 = vmatprep.subr.mxu0 0.0
        %1497 = vmatpush2.xpose.msra.mxu0 0.0
        %1498 = vmatprep.subr.mxu0 0.0
        %1499 = vmatpush2.xpose.msra.mxu0 0.0
        %1500 = vmatprep.subr.mxu0 0.0
        %1501 = vmatpush2.xpose.msra.mxu0 0.0
        %1502 = vmatprep.subr.mxu0 0.0
        %1503 = vmatpush2.xpose.msra.mxu0 0.0
        %1504 = vmatprep.subr.mxu0 0.0
        %1505 = vmatpush2.xpose.msra.mxu0 0.0
        %1506 = vmatprep.subr.mxu0 0.0
        %1507 = vmatpush2.xpose.msra.mxu0 0.0
        %1508 = vmatprep.subr.mxu0 0.0
        %1509 = vmatpush2.xpose.msra.mxu0 0.0
        %1510 = vmatprep.subr.mxu0 0.0
        %1511 = vmatpush2.xpose.msra.mxu0 0.0
        %1512 = vmatprep.subr.mxu0 0.0
        %1513 = vmatpush2.xpose.msra.mxu0 0.0
        %1514 = vmatprep.subr.mxu0 0.0
        %1515 = vmatpush2.xpose.msra.mxu0 0.0
        %1516 = vmatprep.mubr.f32.mxu0 0.0
        %1517 = vmatmul.mubr.f32.gmra.mxu0 %v1444
        %v1518 = vpop.f32.mrf.mxu0
        %v1519 = vadd.f32 0.0, %v1518
        %v1520 = vpop.f32.mrf.mxu0
        %1521 = vmatprep.mubr.f32.mxu0 0.0
        %1522 = vmatmul.mubr.f32.gmra.mxu0 %v1446
        %v1523 = vpop.f32.mrf.mxu0
        %v1524 = vadd.f32 0.0, %v1523
        %v1525 = vpop.f32.mrf.mxu0
        %1526 = vdwg.mxu0
        %v1527 = vsel %vm877, %v1519, -inf
        %1528 = vmax.xlane.f32.xlu0 %v1527
        %v1529 = vpop.xlane.xlu0 %1528
        %v1530 = vsel %vm877, %v1524, -inf
        %1531 = vmax.xlane.f32.xlu0 %v1530
        %v1532 = vpop.xlane.xlu0 %1531
        %v1533 = vsub.f32 %v1519, %v1529
        %v1534 = vsub.f32 %v1524, %v1532
        %v1535 = vmul.f32 %v1533, 1.442695
        %v1536 = vpow.pop %v1535
        %v1537 = vmul.f32 %v1534, 1.442695
        %v1538 = vpow.pop %v1537
        %v1539 = vsel %vm877, %v1536, 0.0
        %1540 = vadd.xlane.f32.xlu0 %v1539
        %v1541 = vpop.xlane.xlu0 %1540
        %v1542 = vsel %vm877, %v1538, 0.0
        %1543 = vadd.xlane.f32.xlu0 %v1542
        %v1544 = vpop.xlane.xlu0 %1543
        %v1545 = vrcp.pop %v1541
        %v1546 = vmul.f32 %v1536, %v1545
        %v1547 = vrcp.pop %v1544
        %v1548 = vmul.f32 %v1538, %v1547
        %1549 = vrot.lane.b32.xlu0 %v867, 96
        %v1550 = vpop.permute.xlu0 %1549
        %1551 = vrot.lane.b32.xlu0 %v872, 96
        %v1552 = vpop.permute.xlu0 %1551
        %v1556 = vsel %vm877, %v1546, 0
        %v1559 = vsel %vm877, %v1548, 0
        %1561 = vmatprep.subr.mxu0 0.0
        %1562 = vmatpush1.msra.mxu0 0.0
        %1563 = vmatprep.subr.mxu0 0.0
        %1564 = vmatpush1.msra.mxu0 0.0
        %1565 = vmatprep.subr.mxu0 0.0
        %1566 = vmatpush1.msra.mxu0 0.0
        %1567 = vmatprep.subr.mxu0 0.0
        %1568 = vmatpush1.msra.mxu0 0.0
        %1569 = vmatprep.subr.mxu0 0.0
        %1570 = vmatpush1.msra.mxu0 0.0
        %1571 = vmatprep.subr.mxu0 0.0
        %1572 = vmatpush1.msra.mxu0 0.0
        %1573 = vmatprep.subr.mxu0 0.0
        %1574 = vmatpush1.msra.mxu0 0.0
        %1575 = vmatprep.subr.mxu0 0.0
        %1576 = vmatpush1.msra.mxu0 0.0
        %1577 = vmatprep.subr.mxu0 0.0
        %1578 = vmatpush1.msra.mxu0 0.0
        %1579 = vmatprep.subr.mxu0 0.0
        %1580 = vmatpush1.msra.mxu0 0.0
        %1581 = vmatprep.subr.mxu0 0.0
        %1582 = vmatpush1.msra.mxu0 0.0
        %1583 = vmatprep.subr.mxu0 0.0
        %1584 = vmatpush1.msra.mxu0 0.0
        %1585 = vmatprep.subr.mxu0 0.0
        %1586 = vmatpush1.msra.mxu0 0.0
        %1587 = vmatprep.subr.mxu0 0.0
        %1588 = vmatpush1.msra.mxu0 0.0
        %1589 = vmatprep.subr.mxu0 0.0
        %1590 = vmatpush1.msra.mxu0 %v1552
        %1591 = vmatprep.subr.mxu0 0.0
        %1592 = vmatpush1.msra.mxu0 %v1550
        %1593 = vmatprep.subr.mxu0 0.0
        %1594 = vmatpush2.msra.mxu0 0.0
        %1595 = vmatprep.subr.mxu0 0.0
        %1596 = vmatpush2.msra.mxu0 0.0
        %1597 = vmatprep.subr.mxu0 0.0
        %1598 = vmatpush2.msra.mxu0 0.0
        %1599 = vmatprep.subr.mxu0 0.0
        %1600 = vmatpush2.msra.mxu0 0.0
        %1601 = vmatprep.subr.mxu0 0.0
        %1602 = vmatpush2.msra.mxu0 0.0
        %1603 = vmatprep.subr.mxu0 0.0
        %1604 = vmatpush2.msra.mxu0 0.0
        %1605 = vmatprep.subr.mxu0 0.0
        %1606 = vmatpush2.msra.mxu0 0.0
        %1607 = vmatprep.subr.mxu0 0.0
        %1608 = vmatpush2.msra.mxu0 0.0
        %1609 = vmatprep.subr.mxu0 0.0
        %1610 = vmatpush2.msra.mxu0 0.0
        %1611 = vmatprep.subr.mxu0 0.0
        %1612 = vmatpush2.msra.mxu0 0.0
        %1613 = vmatprep.subr.mxu0 0.0
        %1614 = vmatpush2.msra.mxu0 0.0
        %1615 = vmatprep.subr.mxu0 0.0
        %1616 = vmatpush2.msra.mxu0 0.0
        %1617 = vmatprep.subr.mxu0 0.0
        %1618 = vmatpush2.msra.mxu0 0.0
        %1619 = vmatprep.subr.mxu0 0.0
        %1620 = vmatpush2.msra.mxu0 0.0
        %1621 = vmatprep.subr.mxu0 0.0
        %1622 = vmatpush2.msra.mxu0 0.0
        %1623 = vmatprep.subr.mxu0 0.0
        %1624 = vmatpush2.msra.mxu0 0.0
        %1625 = vmatprep.mubr.f32.mxu0 0.0
        %1626 = vmatmul.mubr.f32.gmra.mxu0 %v1556
        %v1627 = vpop.f32.mrf.mxu0
        %v1628 = vadd.f32 0.0, %v1627
        %v1629 = vpop.f32.mrf.mxu0
        %1630 = vmatprep.mubr.f32.mxu0 0.0
        %1631 = vmatmul.mubr.f32.gmra.mxu0 %v1559
        %v1632 = vpop.f32.mrf.mxu0
        %v1633 = vadd.f32 0.0, %v1632
        %v1634 = vpop.f32.mrf.mxu0
        %1635 = vdwg.mxu0
        %v1636 = vld [vmem:[#allocation5 + $0x20] sm:$0xff]
        %v1637 = vld [vmem:[#allocation5 + $0x28] sm:$0xff]
        %v1639 = vsel %vm877, %v1628, 0
        %v1642 = vsel %vm877, %v1633, 0
        %1644 = vmatprep.subr.mxu0 0.0
        %1645 = vmatpush1.msra.mxu0 0.0
        %1646 = vmatprep.subr.mxu0 0.0
        %1647 = vmatpush1.msra.mxu0 0.0
        %1648 = vmatprep.subr.mxu0 0.0
        %1649 = vmatpush1.msra.mxu0 0.0
        %1650 = vmatprep.subr.mxu0 0.0
        %1651 = vmatpush1.msra.mxu0 0.0
        %1652 = vmatprep.subr.mxu0 0.0
        %1653 = vmatpush1.msra.mxu0 0.0
        %1654 = vmatprep.subr.mxu0 0.0
        %1655 = vmatpush1.msra.mxu0 0.0
        %1656 = vmatprep.subr.mxu0 0.0
        %1657 = vmatpush1.msra.mxu0 0.0
        %1658 = vmatprep.subr.mxu0 0.0
        %1659 = vmatpush1.msra.mxu0 0.0
        %1660 = vmatprep.subr.mxu0 0.0
        %1661 = vmatpush1.msra.mxu0 0.0
        %1662 = vmatprep.subr.mxu0 0.0
        %1663 = vmatpush1.msra.mxu0 0.0
        %1664 = vmatprep.subr.mxu0 0.0
        %1665 = vmatpush1.msra.mxu0 0.0
        %1666 = vmatprep.subr.mxu0 0.0
        %1667 = vmatpush1.msra.mxu0 0.0
        %1668 = vmatprep.subr.mxu0 0.0
        %1669 = vmatpush1.msra.mxu0 0.0
        %1670 = vmatprep.subr.mxu0 0.0
        %1671 = vmatpush1.msra.mxu0 0.0
        %1672 = vmatprep.subr.mxu0 0.0
        %1673 = vmatpush1.msra.mxu0 %v1637
        %1674 = vmatprep.subr.mxu0 0.0
        %1675 = vmatpush1.msra.mxu0 %v1636
        %1676 = vmatprep.subr.mxu0 0.0
        %1677 = vmatpush2.msra.mxu0 0.0
        %1678 = vmatprep.subr.mxu0 0.0
        %1679 = vmatpush2.msra.mxu0 0.0
        %1680 = vmatprep.subr.mxu0 0.0
        %1681 = vmatpush2.msra.mxu0 0.0
        %1682 = vmatprep.subr.mxu0 0.0
        %1683 = vmatpush2.msra.mxu0 0.0
        %1684 = vmatprep.subr.mxu0 0.0
        %1685 = vmatpush2.msra.mxu0 0.0
        %1686 = vmatprep.subr.mxu0 0.0
        %1687 = vmatpush2.msra.mxu0 0.0
        %1688 = vmatprep.subr.mxu0 0.0
        %1689 = vmatpush2.msra.mxu0 0.0
        %1690 = vmatprep.subr.mxu0 0.0
        %1691 = vmatpush2.msra.mxu0 0.0
        %1692 = vmatprep.subr.mxu0 0.0
        %1693 = vmatpush2.msra.mxu0 0.0
        %1694 = vmatprep.subr.mxu0 0.0
        %1695 = vmatpush2.msra.mxu0 0.0
        %1696 = vmatprep.subr.mxu0 0.0
        %1697 = vmatpush2.msra.mxu0 0.0
        %1698 = vmatprep.subr.mxu0 0.0
        %1699 = vmatpush2.msra.mxu0 0.0
        %1700 = vmatprep.subr.mxu0 0.0
        %1701 = vmatpush2.msra.mxu0 0.0
        %1702 = vmatprep.subr.mxu0 0.0
        %1703 = vmatpush2.msra.mxu0 0.0
        %1704 = vmatprep.subr.mxu0 0.0
        %1705 = vmatpush2.msra.mxu0 0.0
        %1706 = vmatprep.subr.mxu0 0.0
        %1707 = vmatpush2.msra.mxu0 0.0
        %1708 = vmatprep.mubr.f32.mxu0 0.0
        %1709 = vmatmul.mubr.f32.gmra.mxu0 %v1639
        %v1710 = vpop.f32.mrf.mxu0
        %v1711 = vadd.f32 0.0, %v1710
        %v1712 = vpop.f32.mrf.mxu0
        %1713 = vmatprep.mubr.f32.mxu0 0.0
        %1714 = vmatmul.mubr.f32.gmra.mxu0 %v1642
        %v1715 = vpop.f32.mrf.mxu0
        %v1716 = vadd.f32 0.0, %v1715
        %v1717 = vpop.f32.mrf.mxu0
        %1718 = vdwg.mxu0
        %v1719 = vadd.f32 %v1428, %v1711
        %v1720 = vadd.f32 %v1433, %v1716
        %1721 = vrot.lane.b32.xlu0 %v875, 80
        %v1722 = vpop.permute.xlu0 %1721
        %1723 = vrot.lane.b32.xlu0 %v876, 80
        %v1724 = vpop.permute.xlu0 %1723
        %1725 = vrot.lane.b32.xlu0 %v777, 80
        %v1726 = vpop.permute.xlu0 %1725
        %1727 = vrot.lane.b32.xlu0 %v782, 80
        %v1728 = vpop.permute.xlu0 %1727
        %v1729 = vsel %vm877, %v1722, 0
        %v1731 = vsel %vm877, %v1724, 0
        %v1733 = vsel %vm877, %v1726, 0
        %v1735 = vsel %vm877, %v1728, 0
        %1737 = vmatprep.subr.mxu0 0.0
        %1738 = vmatpush1.xpose.msra.mxu0 0.0
        %1739 = vmatprep.subr.mxu0 0.0
        %1740 = vmatpush1.xpose.msra.mxu0 0.0
        %1741 = vmatprep.subr.mxu0 0.0
        %1742 = vmatpush1.xpose.msra.mxu0 0.0
        %1743 = vmatprep.subr.mxu0 0.0
        %1744 = vmatpush1.xpose.msra.mxu0 0.0
        %1745 = vmatprep.subr.mxu0 0.0
        %1746 = vmatpush1.xpose.msra.mxu0 0.0
        %1747 = vmatprep.subr.mxu0 0.0
        %1748 = vmatpush1.xpose.msra.mxu0 0.0
        %1749 = vmatprep.subr.mxu0 0.0
        %1750 = vmatpush1.xpose.msra.mxu0 0.0
        %1751 = vmatprep.subr.mxu0 0.0
        %1752 = vmatpush1.xpose.msra.mxu0 0.0
        %1753 = vmatprep.subr.mxu0 0.0
        %1754 = vmatpush1.xpose.msra.mxu0 0.0
        %1755 = vmatprep.subr.mxu0 0.0
        %1756 = vmatpush1.xpose.msra.mxu0 0.0
        %1757 = vmatprep.subr.mxu0 0.0
        %1758 = vmatpush1.xpose.msra.mxu0 0.0
        %1759 = vmatprep.subr.mxu0 0.0
        %1760 = vmatpush1.xpose.msra.mxu0 0.0
        %1761 = vmatprep.subr.mxu0 0.0
        %1762 = vmatpush1.xpose.msra.mxu0 0.0
        %1763 = vmatprep.subr.mxu0 0.0
        %1764 = vmatpush1.xpose.msra.mxu0 0.0
        %1765 = vmatprep.subr.mxu0 0.0
        %1766 = vmatpush1.xpose.msra.mxu0 %v1735
        %1767 = vmatprep.subr.mxu0 0.0
        %1768 = vmatpush1.xpose.msra.mxu0 %v1733
        %1769 = vmatprep.subr.mxu0 0.0
        %1770 = vmatpush2.xpose.msra.mxu0 0.0
        %1771 = vmatprep.subr.mxu0 0.0
        %1772 = vmatpush2.xpose.msra.mxu0 0.0
        %1773 = vmatprep.subr.mxu0 0.0
        %1774 = vmatpush2.xpose.msra.mxu0 0.0
        %1775 = vmatprep.subr.mxu0 0.0
        %1776 = vmatpush2.xpose.msra.mxu0 0.0
        %1777 = vmatprep.subr.mxu0 0.0
        %1778 = vmatpush2.xpose.msra.mxu0 0.0
        %1779 = vmatprep.subr.mxu0 0.0
        %1780 = vmatpush2.xpose.msra.mxu0 0.0
        %1781 = vmatprep.subr.mxu0 0.0
        %1782 = vmatpush2.xpose.msra.mxu0 0.0
        %1783 = vmatprep.subr.mxu0 0.0
        %1784 = vmatpush2.xpose.msra.mxu0 0.0
        %1785 = vmatprep.subr.mxu0 0.0
        %1786 = vmatpush2.xpose.msra.mxu0 0.0
        %1787 = vmatprep.subr.mxu0 0.0
        %1788 = vmatpush2.xpose.msra.mxu0 0.0
        %1789 = vmatprep.subr.mxu0 0.0
        %1790 = vmatpush2.xpose.msra.mxu0 0.0
        %1791 = vmatprep.subr.mxu0 0.0
        %1792 = vmatpush2.xpose.msra.mxu0 0.0
        %1793 = vmatprep.subr.mxu0 0.0
        %1794 = vmatpush2.xpose.msra.mxu0 0.0
        %1795 = vmatprep.subr.mxu0 0.0
        %1796 = vmatpush2.xpose.msra.mxu0 0.0
        %1797 = vmatprep.subr.mxu0 0.0
        %1798 = vmatpush2.xpose.msra.mxu0 0.0
        %1799 = vmatprep.subr.mxu0 0.0
        %1800 = vmatpush2.xpose.msra.mxu0 0.0
        %1801 = vmatprep.mubr.f32.mxu0 0.0
        %1802 = vmatmul.mubr.f32.gmra.mxu0 %v1729
        %v1803 = vpop.f32.mrf.mxu0
        %v1804 = vadd.f32 0.0, %v1803
        %v1805 = vpop.f32.mrf.mxu0
        %1806 = vmatprep.mubr.f32.mxu0 0.0
        %1807 = vmatmul.mubr.f32.gmra.mxu0 %v1731
        %v1808 = vpop.f32.mrf.mxu0
        %v1809 = vadd.f32 0.0, %v1808
        %v1810 = vpop.f32.mrf.mxu0
        %1811 = vdwg.mxu0
        %v1812 = vsel %vm877, %v1804, -inf
        %1813 = vmax.xlane.f32.xlu0 %v1812
        %v1814 = vpop.xlane.xlu0 %1813
        %v1815 = vsel %vm877, %v1809, -inf
        %1816 = vmax.xlane.f32.xlu0 %v1815
        %v1817 = vpop.xlane.xlu0 %1816
        %v1818 = vsub.f32 %v1804, %v1814
        %v1819 = vsub.f32 %v1809, %v1817
        %v1820 = vmul.f32 %v1818, 1.442695
        %v1821 = vpow.pop %v1820
        %v1822 = vmul.f32 %v1819, 1.442695
        %v1823 = vpow.pop %v1822
        %v1824 = vsel %vm877, %v1821, 0.0
        %1825 = vadd.xlane.f32.xlu0 %v1824
        %v1826 = vpop.xlane.xlu0 %1825
        %v1827 = vsel %vm877, %v1823, 0.0
        %1828 = vadd.xlane.f32.xlu0 %v1827
        %v1829 = vpop.xlane.xlu0 %1828
        %v1830 = vrcp.pop %v1826
        %v1831 = vmul.f32 %v1821, %v1830
        %v1832 = vrcp.pop %v1829
        %v1833 = vmul.f32 %v1823, %v1832
        %1834 = vrot.lane.b32.xlu0 %v867, 80
        %v1835 = vpop.permute.xlu0 %1834
        %1836 = vrot.lane.b32.xlu0 %v872, 80
        %v1837 = vpop.permute.xlu0 %1836
        %v1841 = vsel %vm877, %v1831, 0
        %v1844 = vsel %vm877, %v1833, 0
        %1846 = vmatprep.subr.mxu0 0.0
        %1847 = vmatpush1.msra.mxu0 0.0
        %1848 = vmatprep.subr.mxu0 0.0
        %1849 = vmatpush1.msra.mxu0 0.0
        %1850 = vmatprep.subr.mxu0 0.0
        %1851 = vmatpush1.msra.mxu0 0.0
        %1852 = vmatprep.subr.mxu0 0.0
        %1853 = vmatpush1.msra.mxu0 0.0
        %1854 = vmatprep.subr.mxu0 0.0
        %1855 = vmatpush1.msra.mxu0 0.0
        %1856 = vmatprep.subr.mxu0 0.0
        %1857 = vmatpush1.msra.mxu0 0.0
        %1858 = vmatprep.subr.mxu0 0.0
        %1859 = vmatpush1.msra.mxu0 0.0
        %1860 = vmatprep.subr.mxu0 0.0
        %1861 = vmatpush1.msra.mxu0 0.0
        %1862 = vmatprep.subr.mxu0 0.0
        %1863 = vmatpush1.msra.mxu0 0.0
        %1864 = vmatprep.subr.mxu0 0.0
        %1865 = vmatpush1.msra.mxu0 0.0
        %1866 = vmatprep.subr.mxu0 0.0
        %1867 = vmatpush1.msra.mxu0 0.0
        %1868 = vmatprep.subr.mxu0 0.0
        %1869 = vmatpush1.msra.mxu0 0.0
        %1870 = vmatprep.subr.mxu0 0.0
        %1871 = vmatpush1.msra.mxu0 0.0
        %1872 = vmatprep.subr.mxu0 0.0
        %1873 = vmatpush1.msra.mxu0 0.0
        %1874 = vmatprep.subr.mxu0 0.0
        %1875 = vmatpush1.msra.mxu0 %v1837
        %1876 = vmatprep.subr.mxu0 0.0
        %1877 = vmatpush1.msra.mxu0 %v1835
        %1878 = vmatprep.subr.mxu0 0.0
        %1879 = vmatpush2.msra.mxu0 0.0
        %1880 = vmatprep.subr.mxu0 0.0
        %1881 = vmatpush2.msra.mxu0 0.0
        %1882 = vmatprep.subr.mxu0 0.0
        %1883 = vmatpush2.msra.mxu0 0.0
        %1884 = vmatprep.subr.mxu0 0.0
        %1885 = vmatpush2.msra.mxu0 0.0
        %1886 = vmatprep.subr.mxu0 0.0
        %1887 = vmatpush2.msra.mxu0 0.0
        %1888 = vmatprep.subr.mxu0 0.0
        %1889 = vmatpush2.msra.mxu0 0.0
        %1890 = vmatprep.subr.mxu0 0.0
        %1891 = vmatpush2.msra.mxu0 0.0
        %1892 = vmatprep.subr.mxu0 0.0
        %1893 = vmatpush2.msra.mxu0 0.0
        %1894 = vmatprep.subr.mxu0 0.0
        %1895 = vmatpush2.msra.mxu0 0.0
        %1896 = vmatprep.subr.mxu0 0.0
        %1897 = vmatpush2.msra.mxu0 0.0
        %1898 = vmatprep.subr.mxu0 0.0
        %1899 = vmatpush2.msra.mxu0 0.0
        %1900 = vmatprep.subr.mxu0 0.0
        %1901 = vmatpush2.msra.mxu0 0.0
        %1902 = vmatprep.subr.mxu0 0.0
        %1903 = vmatpush2.msra.mxu0 0.0
        %1904 = vmatprep.subr.mxu0 0.0
        %1905 = vmatpush2.msra.mxu0 0.0
        %1906 = vmatprep.subr.mxu0 0.0
        %1907 = vmatpush2.msra.mxu0 0.0
        %1908 = vmatprep.subr.mxu0 0.0
        %1909 = vmatpush2.msra.mxu0 0.0
        %1910 = vmatprep.mubr.f32.mxu0 0.0
        %1911 = vmatmul.mubr.f32.gmra.mxu0 %v1841
        %v1912 = vpop.f32.mrf.mxu0
        %v1913 = vadd.f32 0.0, %v1912
        %v1914 = vpop.f32.mrf.mxu0
        %1915 = vmatprep.mubr.f32.mxu0 0.0
        %1916 = vmatmul.mubr.f32.gmra.mxu0 %v1844
        %v1917 = vpop.f32.mrf.mxu0
        %v1918 = vadd.f32 0.0, %v1917
        %v1919 = vpop.f32.mrf.mxu0
        %1920 = vdwg.mxu0
        %v1921 = vld [vmem:[#allocation5 + $0x30] sm:$0xff]
        %v1922 = vld [vmem:[#allocation5 + $0x38] sm:$0xff]
        %v1924 = vsel %vm877, %v1913, 0
        %v1927 = vsel %vm877, %v1918, 0
        %1929 = vmatprep.subr.mxu0 0.0
        %1930 = vmatpush1.msra.mxu0 0.0
        %1931 = vmatprep.subr.mxu0 0.0
        %1932 = vmatpush1.msra.mxu0 0.0
        %1933 = vmatprep.subr.mxu0 0.0
        %1934 = vmatpush1.msra.mxu0 0.0
        %1935 = vmatprep.subr.mxu0 0.0
        %1936 = vmatpush1.msra.mxu0 0.0
        %1937 = vmatprep.subr.mxu0 0.0
        %1938 = vmatpush1.msra.mxu0 0.0
        %1939 = vmatprep.subr.mxu0 0.0
        %1940 = vmatpush1.msra.mxu0 0.0
        %1941 = vmatprep.subr.mxu0 0.0
        %1942 = vmatpush1.msra.mxu0 0.0
        %1943 = vmatprep.subr.mxu0 0.0
        %1944 = vmatpush1.msra.mxu0 0.0
        %1945 = vmatprep.subr.mxu0 0.0
        %1946 = vmatpush1.msra.mxu0 0.0
        %1947 = vmatprep.subr.mxu0 0.0
        %1948 = vmatpush1.msra.mxu0 0.0
        %1949 = vmatprep.subr.mxu0 0.0
        %1950 = vmatpush1.msra.mxu0 0.0
        %1951 = vmatprep.subr.mxu0 0.0
        %1952 = vmatpush1.msra.mxu0 0.0
        %1953 = vmatprep.subr.mxu0 0.0
        %1954 = vmatpush1.msra.mxu0 0.0
        %1955 = vmatprep.subr.mxu0 0.0
        %1956 = vmatpush1.msra.mxu0 0.0
        %1957 = vmatprep.subr.mxu0 0.0
        %1958 = vmatpush1.msra.mxu0 %v1922
        %1959 = vmatprep.subr.mxu0 0.0
        %1960 = vmatpush1.msra.mxu0 %v1921
        %1961 = vmatprep.subr.mxu0 0.0
        %1962 = vmatpush2.msra.mxu0 0.0
        %1963 = vmatprep.subr.mxu0 0.0
        %1964 = vmatpush2.msra.mxu0 0.0
        %1965 = vmatprep.subr.mxu0 0.0
        %1966 = vmatpush2.msra.mxu0 0.0
        %1967 = vmatprep.subr.mxu0 0.0
        %1968 = vmatpush2.msra.mxu0 0.0
        %1969 = vmatprep.subr.mxu0 0.0
        %1970 = vmatpush2.msra.mxu0 0.0
        %1971 = vmatprep.subr.mxu0 0.0
        %1972 = vmatpush2.msra.mxu0 0.0
        %1973 = vmatprep.subr.mxu0 0.0
        %1974 = vmatpush2.msra.mxu0 0.0
        %1975 = vmatprep.subr.mxu0 0.0
        %1976 = vmatpush2.msra.mxu0 0.0
        %1977 = vmatprep.subr.mxu0 0.0
        %1978 = vmatpush2.msra.mxu0 0.0
        %1979 = vmatprep.subr.mxu0 0.0
        %1980 = vmatpush2.msra.mxu0 0.0
        %1981 = vmatprep.subr.mxu0 0.0
        %1982 = vmatpush2.msra.mxu0 0.0
        %1983 = vmatprep.subr.mxu0 0.0
        %1984 = vmatpush2.msra.mxu0 0.0
        %1985 = vmatprep.subr.mxu0 0.0
        %1986 = vmatpush2.msra.mxu0 0.0
        %1987 = vmatprep.subr.mxu0 0.0
        %1988 = vmatpush2.msra.mxu0 0.0
        %1989 = vmatprep.subr.mxu0 0.0
        %1990 = vmatpush2.msra.mxu0 0.0
        %1991 = vmatprep.subr.mxu0 0.0
        %1992 = vmatpush2.msra.mxu0 0.0
        %1993 = vmatprep.mubr.f32.mxu0 0.0
        %1994 = vmatmul.mubr.f32.gmra.mxu0 %v1924
        %v1995 = vpop.f32.mrf.mxu0
        %v1996 = vadd.f32 0.0, %v1995
        %v1997 = vpop.f32.mrf.mxu0
        %1998 = vmatprep.mubr.f32.mxu0 0.0
        %1999 = vmatmul.mubr.f32.gmra.mxu0 %v1927
        %v2000 = vpop.f32.mrf.mxu0
        %v2001 = vadd.f32 0.0, %v2000
        %v2002 = vpop.f32.mrf.mxu0
        %2003 = vdwg.mxu0
        %v2004 = vadd.f32 %v1719, %v1996
        %v2005 = vadd.f32 %v1720, %v2001
        %v2006 = vld [vmem:[%s8] sm:$0x1]
        %v2008 = vlaneseq
        %v2009 = vshrl.u32 %v2008, 7
        %v2010 = vsub.s32 0, %v2009
        %v2011 = vrot.slane %v2006, %v2010
        %v2013 = vadd.f32 %v2004, %v2011
        %v2014 = vadd.f32 %v2005, %v2011
        %v2015 = vadd.f32 %v596, %v2013
        %v2016 = vadd.f32 %v597, %v2014
        %v2017 = vsel %vm613, %v2015, 0.0
        %2018 = vadd.xlane.f32.xlu0 %v2017
        %v2019 = vpop.xlane.xlu0 %2018
        %v2020 = vsel %vm613, %v2016, 0.0
        %2021 = vadd.xlane.f32.xlu0 %v2020
        %v2022 = vpop.xlane.xlu0 %2021
        %v2023 = vrcp.pop 64.0
        %v2024 = vmul.f32 %v2019, %v2023
        %v2025 = vmul.f32 %v2022, %v2023
        %v2026 = vsub.f32 %v2015, %v2024
        %v2027 = vsub.f32 %v2016, %v2025
        %v2028 = vmul.f32 %v2026, %v2026
        %v2029 = vmul.f32 %v2027, %v2027
        %v2030 = vsel %vm613, %v2028, 0.0
        %2031 = vadd.xlane.f32.xlu0 %v2030
        %v2032 = vpop.xlane.xlu0 %2031
        %v2033 = vsel %vm613, %v2029, 0.0
        %2034 = vadd.xlane.f32.xlu0 %v2033
        %v2035 = vpop.xlane.xlu0 %2034
        %v2036 = vmul.f32 %v2032, %v2023
        %v2037 = vmul.f32 %v2035, %v2023
        %v2038 = vadd.f32 %v2036, 1e-05
        %v2039 = vadd.f32 %v2037, 1e-05
        %v2040 = vrsqrt.pop %v2038
        %v2041 = vrsqrt.pop %v2039
        %v2042 = vmul.f32 %v2026, %v2040
        %v2043 = vmul.f32 %v2027, %v2041
        %v2044 = vld [vmem:[%s9] sm:$0x1]
        %v2046 = vlaneseq
        %v2047 = vshrl.u32 %v2046, 7
        %v2048 = vsub.s32 0, %v2047
        %v2049 = vrot.slane %v2044, %v2048
        %v2051 = vmul.f32 %v2042, %v2049
        %v2052 = vmul.f32 %v2043, %v2049
        %v2053 = vld [vmem:[%s10] sm:$0x1]
        %v2055 = vlaneseq
        %v2056 = vshrl.u32 %v2055, 7
        %v2057 = vsub.s32 0, %v2056
        %v2058 = vrot.slane %v2053, %v2057
        %v2060 = vadd.f32 %v2051, %v2058
        %v2061 = vadd.f32 %v2052, %v2058
        %v2062 = vld [vmem:[#allocation7] sm:$0xff]
        %v2063 = vld [vmem:[#allocation7 + $0x8] sm:$0xff]
        %v2064 = vld [vmem:[#allocation7 + $0x10] sm:$0xff]
        %v2065 = vld [vmem:[#allocation7 + $0x18] sm:$0xff]
        %v2066 = vld [vmem:[#allocation7 + $0x20] sm:$0xff]
        %v2067 = vld [vmem:[#allocation7 + $0x28] sm:$0xff]
        %v2068 = vld [vmem:[#allocation7 + $0x30] sm:$0xff]
        %v2069 = vld [vmem:[#allocation7 + $0x38] sm:$0xff]
        %v2070 = vld [vmem:[%s12] sm:$0x1]
        %v2072 = vlaneseq
        %v2073 = vshrl.u32 %v2072, 7
        %v2074 = vsub.s32 0, %v2073
        %v2075 = vrot.slane %v2070, %v2074
        %v2078 = vsel %vm613, %v2060, 0
        %v2081 = vsel %vm613, %v2061, 0
        %2083 = vmatprep.subr.mxu0 0.0
        %2084 = vmatpush1.msra.mxu0 0.0
        %2085 = vmatprep.subr.mxu0 0.0
        %2086 = vmatpush1.msra.mxu0 0.0
        %2087 = vmatprep.subr.mxu0 0.0
        %2088 = vmatpush1.msra.mxu0 0.0
        %2089 = vmatprep.subr.mxu0 0.0
        %2090 = vmatpush1.msra.mxu0 0.0
        %2091 = vmatprep.subr.mxu0 0.0
        %2092 = vmatpush1.msra.mxu0 0.0
        %2093 = vmatprep.subr.mxu0 0.0
        %2094 = vmatpush1.msra.mxu0 0.0
        %2095 = vmatprep.subr.mxu0 0.0
        %2096 = vmatpush1.msra.mxu0 0.0
        %2097 = vmatprep.subr.mxu0 0.0
        %2098 = vmatpush1.msra.mxu0 0.0
        %2099 = vmatprep.subr.mxu0 0.0
        %2100 = vmatpush1.msra.mxu0 %v2069
        %2101 = vmatprep.subr.mxu0 0.0
        %2102 = vmatpush1.msra.mxu0 %v2068
        %2103 = vmatprep.subr.mxu0 0.0
        %2104 = vmatpush1.msra.mxu0 %v2067
        %2105 = vmatprep.subr.mxu0 0.0
        %2106 = vmatpush1.msra.mxu0 %v2066
        %2107 = vmatprep.subr.mxu0 0.0
        %2108 = vmatpush1.msra.mxu0 %v2065
        %2109 = vmatprep.subr.mxu0 0.0
        %2110 = vmatpush1.msra.mxu0 %v2064
        %2111 = vmatprep.subr.mxu0 0.0
        %2112 = vmatpush1.msra.mxu0 %v2063
        %2113 = vmatprep.subr.mxu0 0.0
        %2114 = vmatpush1.msra.mxu0 %v2062
        %2115 = vmatprep.subr.mxu0 0.0
        %2116 = vmatpush2.msra.mxu0 0.0
        %2117 = vmatprep.subr.mxu0 0.0
        %2118 = vmatpush2.msra.mxu0 0.0
        %2119 = vmatprep.subr.mxu0 0.0
        %2120 = vmatpush2.msra.mxu0 0.0
        %2121 = vmatprep.subr.mxu0 0.0
        %2122 = vmatpush2.msra.mxu0 0.0
        %2123 = vmatprep.subr.mxu0 0.0
        %2124 = vmatpush2.msra.mxu0 0.0
        %2125 = vmatprep.subr.mxu0 0.0
        %2126 = vmatpush2.msra.mxu0 0.0
        %2127 = vmatprep.subr.mxu0 0.0
        %2128 = vmatpush2.msra.mxu0 0.0
        %2129 = vmatprep.subr.mxu0 0.0
        %2130 = vmatpush2.msra.mxu0 0.0
        %2131 = vmatprep.subr.mxu0 0.0
        %2132 = vmatpush2.msra.mxu0 0.0
        %2133 = vmatprep.subr.mxu0 0.0
        %2134 = vmatpush2.msra.mxu0 0.0
        %2135 = vmatprep.subr.mxu0 0.0
        %2136 = vmatpush2.msra.mxu0 0.0
        %2137 = vmatprep.subr.mxu0 0.0
        %2138 = vmatpush2.msra.mxu0 0.0
        %2139 = vmatprep.subr.mxu0 0.0
        %2140 = vmatpush2.msra.mxu0 0.0
        %2141 = vmatprep.subr.mxu0 0.0
        %2142 = vmatpush2.msra.mxu0 0.0
        %2143 = vmatprep.subr.mxu0 0.0
        %2144 = vmatpush2.msra.mxu0 0.0
        %2145 = vmatprep.subr.mxu0 0.0
        %2146 = vmatpush2.msra.mxu0 0.0
        %2147 = vmatprep.mubr.f32.mxu0 0.0
        %2148 = vmatmul.mubr.f32.gmra.mxu0 %v2078
        %v2149 = vpop.f32.mrf.mxu0
        %v2150 = vadd.f32 %v2075, %v2149
        %v2151 = vpop.f32.mrf.mxu0
        %2152 = vmatprep.mubr.f32.mxu0 0.0
        %2153 = vmatmul.mubr.f32.gmra.mxu0 %v2081
        %v2154 = vpop.f32.mrf.mxu0
        %v2155 = vadd.f32 %v2075, %v2154
        %v2156 = vpop.f32.mrf.mxu0
        %2157 = vdwg.mxu0
        %v2158 = vmax.f32 %v2150, 0.0
        %v2159 = vmax.f32 %v2155, 0.0
        %v2160 = vld [vmem:[%s13] sm:$0xff]
        %v2161 = vld [vmem:[%s13 + $0x8] sm:$0xff]
        %v2162 = vld [vmem:[%s13 + $0x10] sm:$0xff]
        %v2163 = vld [vmem:[%s13 + $0x18] sm:$0xff]
        %v2164 = vld [vmem:[%s13 + $0x20] sm:$0xff]
        %v2165 = vld [vmem:[%s13 + $0x28] sm:$0xff]
        %v2166 = vld [vmem:[%s13 + $0x30] sm:$0xff]
        %v2167 = vld [vmem:[%s13 + $0x38] sm:$0xff]
        %v2168 = vld [vmem:[%s13 + $0x40] sm:$0xff]
        %v2169 = vld [vmem:[%s13 + $0x48] sm:$0xff]
        %v2170 = vld [vmem:[%s13 + $0x50] sm:$0xff]
        %v2171 = vld [vmem:[%s13 + $0x58] sm:$0xff]
        %v2172 = vld [vmem:[%s13 + $0x60] sm:$0xff]
        %v2173 = vld [vmem:[%s13 + $0x68] sm:$0xff]
        %v2174 = vld [vmem:[%s13 + $0x70] sm:$0xff]
        %v2175 = vld [vmem:[%s13 + $0x78] sm:$0xff]
        %v2176 = vld [vmem:[%s14] sm:$0x1]
        %v2178 = vlaneseq
        %v2179 = vshrl.u32 %v2178, 7
        %v2180 = vsub.s32 0, %v2179
        %v2181 = vrot.slane %v2176, %v2180
        %2183 = vmatprep.subr.mxu0 0.0
        %2184 = vmatpush1.msra.mxu0 %v2175
        %2185 = vmatprep.subr.mxu0 0.0
        %2186 = vmatpush1.msra.mxu0 %v2174
        %2187 = vmatprep.subr.mxu0 0.0
        %2188 = vmatpush1.msra.mxu0 %v2173
        %2189 = vmatprep.subr.mxu0 0.0
        %2190 = vmatpush1.msra.mxu0 %v2172
        %2191 = vmatprep.subr.mxu0 0.0
        %2192 = vmatpush1.msra.mxu0 %v2171
        %2193 = vmatprep.subr.mxu0 0.0
        %2194 = vmatpush1.msra.mxu0 %v2170
        %2195 = vmatprep.subr.mxu0 0.0
        %2196 = vmatpush1.msra.mxu0 %v2169
        %2197 = vmatprep.subr.mxu0 0.0
        %2198 = vmatpush1.msra.mxu0 %v2168
        %2199 = vmatprep.subr.mxu0 0.0
        %2200 = vmatpush1.msra.mxu0 %v2167
        %2201 = vmatprep.subr.mxu0 0.0
        %2202 = vmatpush1.msra.mxu0 %v2166
        %2203 = vmatprep.subr.mxu0 0.0
        %2204 = vmatpush1.msra.mxu0 %v2165
        %2205 = vmatprep.subr.mxu0 0.0
        %2206 = vmatpush1.msra.mxu0 %v2164
        %2207 = vmatprep.subr.mxu0 0.0
        %2208 = vmatpush1.msra.mxu0 %v2163
        %2209 = vmatprep.subr.mxu0 0.0
        %2210 = vmatpush1.msra.mxu0 %v2162
        %2211 = vmatprep.subr.mxu0 0.0
        %2212 = vmatpush1.msra.mxu0 %v2161
        %2213 = vmatprep.subr.mxu0 0.0
        %2214 = vmatpush1.msra.mxu0 %v2160
        %2215 = vmatprep.subr.mxu0 0.0
        %2216 = vmatpush2.msra.mxu0 0.0
        %2217 = vmatprep.subr.mxu0 0.0
        %2218 = vmatpush2.msra.mxu0 0.0
        %2219 = vmatprep.subr.mxu0 0.0
        %2220 = vmatpush2.msra.mxu0 0.0
        %2221 = vmatprep.subr.mxu0 0.0
        %2222 = vmatpush2.msra.mxu0 0.0
        %2223 = vmatprep.subr.mxu0 0.0
        %2224 = vmatpush2.msra.mxu0 0.0
        %2225 = vmatprep.subr.mxu0 0.0
        %2226 = vmatpush2.msra.mxu0 0.0
        %2227 = vmatprep.subr.mxu0 0.0
        %2228 = vmatpush2.msra.mxu0 0.0
        %2229 = vmatprep.subr.mxu0 0.0
        %2230 = vmatpush2.msra.mxu0 0.0
        %2231 = vmatprep.subr.mxu0 0.0
        %2232 = vmatpush2.msra.mxu0 0.0
        %2233 = vmatprep.subr.mxu0 0.0
        %2234 = vmatpush2.msra.mxu0 0.0
        %2235 = vmatprep.subr.mxu0 0.0
        %2236 = vmatpush2.msra.mxu0 0.0
        %2237 = vmatprep.subr.mxu0 0.0
        %2238 = vmatpush2.msra.mxu0 0.0
        %2239 = vmatprep.subr.mxu0 0.0
        %2240 = vmatpush2.msra.mxu0 0.0
        %2241 = vmatprep.subr.mxu0 0.0
        %2242 = vmatpush2.msra.mxu0 0.0
        %2243 = vmatprep.subr.mxu0 0.0
        %2244 = vmatpush2.msra.mxu0 0.0
        %2245 = vmatprep.subr.mxu0 0.0
        %2246 = vmatpush2.msra.mxu0 0.0
        %2247 = vmatprep.mubr.f32.mxu0 0.0
        %2248 = vmatmul.mubr.f32.gmra.mxu0 %v2158
        %v2249 = vpop.f32.mrf.mxu0
        %v2250 = vadd.f32 %v2181, %v2249
        %v2251 = vpop.f32.mrf.mxu0
        %2252 = vmatprep.mubr.f32.mxu0 0.0
        %2253 = vmatmul.mubr.f32.gmra.mxu0 %v2159
        %v2254 = vpop.f32.mrf.mxu0
        %v2255 = vadd.f32 %v2181, %v2254
        %v2256 = vpop.f32.mrf.mxu0
        %2257 = vdwg.mxu0
        %v2258 = vadd.f32 %v2060, %v2250
        %v2259 = vadd.f32 %v2061, %v2255
        %v2260 = vsel %vm613, %v2258, 0.0
        %2261 = vadd.xlane.f32.xlu0 %v2260
        %v2262 = vpop.xlane.xlu0 %2261
        %v2263 = vsel %vm613, %v2259, 0.0
        %2264 = vadd.xlane.f32.xlu0 %v2263
        %v2265 = vpop.xlane.xlu0 %2264
        %v2266 = vmul.f32 %v2262, %v2023
        %v2267 = vmul.f32 %v2265, %v2023
        %v2268 = vsub.f32 %v2258, %v2266
        %v2269 = vsub.f32 %v2259, %v2267
        %v2270 = vmul.f32 %v2268, %v2268
        %v2271 = vmul.f32 %v2269, %v2269
        %v2272 = vsel %vm613, %v2270, 0.0
        %2273 = vadd.xlane.f32.xlu0 %v2272
        %v2274 = vpop.xlane.xlu0 %2273
        %v2275 = vsel %vm613, %v2271, 0.0
        %2276 = vadd.xlane.f32.xlu0 %v2275
        %v2277 = vpop.xlane.xlu0 %2276
        %v2278 = vmul.f32 %v2274, %v2023
        %v2279 = vmul.f32 %v2277, %v2023
        %v2280 = vadd.f32 %v2278, 1e-05
        %v2281 = vadd.f32 %v2279, 1e-05
        %v2282 = vrsqrt.pop %v2280
        %v2283 = vrsqrt.pop %v2281
        %v2284 = vmul.f32 %v2268, %v2282
        %v2285 = vmul.f32 %v2269, %v2283
        %v2286 = vld [vmem:[%s15] sm:$0x1]
        %v2288 = vlaneseq
        %v2289 = vshrl.u32 %v2288, 7
        %v2290 = vsub.s32 0, %v2289
        %v2291 = vrot.slane %v2286, %v2290
        %v2293 = vmul.f32 %v2284, %v2291
        %v2294 = vmul.f32 %v2285, %v2291
        %v2295 = vld [vmem:[%s16] sm:$0x1]
        %v2297 = vlaneseq
        %v2298 = vshrl.u32 %v2297, 7
        %v2299 = vsub.s32 0, %v2298
        %v2300 = vrot.slane %v2295, %v2299
        %v2302 = vadd.f32 %v2293, %v2300
        %v2303 = vadd.f32 %v2294, %v2300
        %2304 = vst.msk [vmem:[%s595] sm:$0xff] %vm613, %v2302
        %2305 = vst.msk [vmem:[%s595 + $0x8] sm:$0xff] %vm613, %v2303
        %s2306 = sand.u32 %s405, 1
        %s2307 = scalar_lea.sflag [#allocation4], %s2306
        %s2308 = sand.u32 %s405, 1
        %s2309 = smul.addr %s2308, 16
        %s2310 = scalar_lea.vmem [#allocation8], %s2309
        // Predicated region
        $region101: #{tpu_custom_call.1} parent=87 // pred_check
          %p2311 = pneg %p415
        $region102: #{tpu_custom_call.1} parent=87 // pred_check_branch
          %2313 = sbr.rel (%p2311) target = $region104
        $region103: #{tpu_custom_call.1} parent=87 // pred_region
          %s2315 = ssub.s32 256, 256
          %2316 = vsyncadd %s2307, %s2315
          %s2317 = smul.addr %s35, 2
          %s2318 = smul.addr %s2317, 128
          %s2319 = scalar_lea.hbm %s17, %s2318
          %s2320 = sshll.u32 %s2310, 4
          %s2321 = int_to_ptr.vmem [resolvable:$true] %s2320
          %2326 = dma.vmem_to_hbm [thread:$0]  %s2321, 256, %s2319, %s2307, 128, 128, 8
        $region104: #{tpu_custom_call.1} parent=87 // pred_fallthru
          _
      $region88: #{tpu_custom_call.1} parent=5 // pred_fallthru
        _
      %p2327 = scmp.le.s32.totalorder 2, %s30
      // Predicated region
      $region105: #{tpu_custom_call.1} parent=5 // pred_check
        %p2328 = pneg %p2327
      $region106: #{tpu_custom_call.1} parent=5 // pred_check_branch
        %2330 = sbr.rel (%p2328) target = $region108
      $region107: #{tpu_custom_call.1} parent=5 // pred_region
        %s2331 = ssub.s32 %s30, 2
        // Predicated region
        $region109: #{tpu_custom_call.1} parent=107 // pred_check
          %p2332 = pneg %p421
        $region110: #{tpu_custom_call.1} parent=107 // pred_check_branch
          %2334 = sbr.rel (%p2332) target = $region112
        $region111: #{tpu_custom_call.1} parent=107 // pred_region
          %s2335 = sand.u32 %s406, 1
          %s2336 = scalar_lea.sflag [#allocation4], %s2335
          %s2337 = sand.u32 %s406, 1
          %s2338 = smul.addr %s2337, 16
          %s2339 = scalar_lea.vmem [#allocation8], %s2338
          %2340 = dma.done %s2336, 256
        $region112: #{tpu_custom_call.1} parent=107 // pred_fallthru
          _
      $region108: #{tpu_custom_call.1} parent=5 // pred_fallthru
        _
    $region6: #{tpu_custom_call.1} parent=1 // loop_footer
      %s34 = sadd.s32 1, %s30
    $region7: #{tpu_custom_call.1} parent=1 // loop_footer_branch
      %29 = sbr.rel target = $region3
    $region8: #{tpu_custom_call.1} parent=1 // loop_exit
      _
    %2341 = vsyncpa [#allocation3], 1
    %s2342 = scalar_lea.sflag [#allocation3], 1
    %2343 = vsyncpa %s2342, 1
    %2344 = vsyncpa [#allocation6], 1
    %2345 = vsyncpa [#allocation4], 1
    %s2346 = scalar_lea.sflag [#allocation4], 1
    %2347 = vsyncpa %s2346, 1

</llo_original>
